<compile_context>
chip_gen: v7x
topology: tpu7x:2x2x1
jax: 0.10.0
libtpu: 0.0.40
codegen_flags: <defaults>
</compile_context>

<pallas_src>
import jax
import jax.numpy as jnp
from jax.experimental import pallas as pl
from jax.experimental.pallas import tpu as pltpu


def _round_up(n, m):
    return ((n + m - 1) // m) * m


def _make_fused_kan_kernel(degree, out_dims):
    """Kernel computing the whole KAN stack for one batch tile.

    out_dims: tuple of TRUE (unpadded) output widths per layer (static).
    """
    num_layers = len(out_dims)

    def kernel(x_ref, *refs):
        o_ref = refs[-1]
        param_refs = refs[:-1]  # 4 refs per layer: coef2d, bias, gamma, beta

        x = x_ref[...].astype(jnp.float32)  # (TB, in_pad0); padded cols are 0
        for l in range(num_layers):
            coef_ref, bias_ref, gamma_ref, beta_ref = param_refs[4 * l:4 * l + 4]
            cdt = coef_ref.dtype  # matmul operand dtype (f32 or bf16)

            t = jnp.tanh(x)
            # NOTE: the PyTorch clamp(-1+eps, 1-eps) is dropped: with the
            # Chebyshev recurrence it only changes results when tanh saturates
            # to exactly +-1.0 (|x| >~ 9), and then only by ~4e-5.

            # Chebyshev recurrence; T_0 == 1 is the precomputed bias.  Each
            # T_d lands in its own 128-aligned lane slice, so the concat is
            # pure vreg placement (no lane shuffles).
            feats = [t]
            prev2, prev1 = jnp.ones_like(t), t
            for _ in range(2, degree + 1):
                cur = 2.0 * t * prev1 - prev2
                feats.append(cur)
                prev2, prev1 = prev1, cur
            f = feats[0] if degree == 1 else jnp.concatenate(feats, axis=-1)

            # One MXU matmul per layer:
            #   (TB, degree*in_pad) @ (degree*in_pad, out_pad), f32 accumulate.
            acc = bias_ref[...].astype(jnp.float32) + jnp.dot(
                f.astype(cdt), coef_ref[...], preferred_element_type=jnp.float32)

            # LayerNorm over the TRUE out_dim.  Padded columns of acc are
            # exactly zero (zero coef columns + zero bias), so plain lane
            # sums already equal the true-column sums.
            inv_n = 1.0 / out_dims[l]
            mean = jnp.sum(acc, axis=-1, keepdims=True) * inv_n
            mean_sq = jnp.sum(acc * acc, axis=-1, keepdims=True) * inv_n
            var = mean_sq - mean * mean
            xn = (acc - mean) * jax.lax.rsqrt(var + 1e-5)
            # gamma/beta are zero-padded -> padded activations stay exactly 0.
            x = xn * gamma_ref[...] + beta_ref[...]

        o_ref[...] = x.astype(o_ref.dtype)

    return kernel


def init_cheby_kan_params(key, layers_hidden, degree):
    """Deterministic parameter init matching ChebyKANLayerWithNorm.__init__."""
    params = []
    for in_dim, out_dim in zip(layers_hidden[:-1], layers_hidden[1:]):
        key, sub = jax.random.split(key)
        std = 1.0 / (in_dim * (degree + 1))
        coeffs = std * jax.random.normal(
            sub, (in_dim, out_dim, degree + 1), dtype=jnp.float32)
        gamma = jnp.ones((out_dim,), jnp.float32)
        beta = jnp.zeros((out_dim,), jnp.float32)
        params.append((coeffs, gamma, beta))
    return params


def prepare_params(params, coef_dtype=jnp.float32):
    """One-time parameter re-layout (hoisted out of the forward pass).

    Per layer:
      coef2d : (degree*in_pad, out_pad)  row [d*in_pad + i] = coeffs[i, :, d+1];
               zero rows/cols for lane padding; cast to coef_dtype (bf16-ready).
      bias   : (1, out_pad) f32          sum_i coeffs[i, :, 0]   (the T_0 term)
      gamma  : (1, out_pad) f32          LayerNorm weight, zero-padded
      beta   : (1, out_pad) f32          LayerNorm bias,   zero-padded
    All feature dims are padded to multiples of 128 (lane-dense compute).
    """
    layers = []
    in_dims, out_dims = [], []
    degree = None
    prev_out = None
    for coeffs, gamma, beta in params:
        in_dim, out_dim, dp1 = coeffs.shape
        d = dp1 - 1
        assert d >= 1, "degree must be >= 1"
        assert degree is None or degree == d, "all layers must share `degree`"
        assert prev_out is None or prev_out == in_dim, "layer dims must chain"
        degree, prev_out = d, out_dim

        in_pad = _round_up(in_dim, 128)
        out_pad = _round_up(out_dim, 128)

        bias = jnp.zeros((1, out_pad), jnp.float32)
        bias = bias.at[0, :out_dim].set(
            jnp.sum(coeffs[:, :, 0].astype(jnp.float32), axis=0))

        coef = jnp.transpose(coeffs[:, :, 1:], (2, 0, 1)).astype(jnp.float32)
        coef = jnp.pad(coef, ((0, 0), (0, in_pad - in_dim), (0, out_pad - out_dim)))
        coef2d = coef.reshape(d * in_pad, out_pad).astype(coef_dtype)

        g = jnp.zeros((1, out_pad), jnp.float32).at[0, :out_dim].set(
            gamma.astype(jnp.float32))
        b = jnp.zeros((1, out_pad), jnp.float32).at[0, :out_dim].set(
            beta.astype(jnp.float32))

        layers.append((coef2d, bias, g, b))
        in_dims.append(in_dim)
        out_dims.append(out_dim)

    return {
        "layers": layers,
        "degree": degree,
        "in_dim0": in_dims[0],
        "in_pad0": _round_up(in_dims[0], 128),
        "out_dims": tuple(out_dims),
    }


def _pick_batch_tile(B, max_tile, min_steps=8):
    """Tile (multiple of 8) aiming for >= min_steps grid steps, capped at max_tile."""
    tb = _round_up(max(1, -(-B // min_steps)), 8)
    return max(8, min(tb, max_tile))


def cheby_kan_forward(x, prepped, *, batch_tile=2048):
    """Chebyshev_KAN.forward: flatten to (-1, in_dim0), run all layers fused."""
    layers = prepped["layers"]
    degree = prepped["degree"]
    in_dim0 = prepped["in_dim0"]
    in_pad0 = prepped["in_pad0"]
    out_dims = prepped["out_dims"]
    out_pad_last = layers[-1][0].shape[1]

    x = x.reshape(-1, in_dim0).astype(jnp.float32)
    B = x.shape[0]

    tb = _pick_batch_tile(B, batch_tile)
    Bp = _round_up(B, tb)
    # Pad batch to a tile multiple and features to the lane-dense width.
    x = jnp.pad(x, ((0, Bp - B), (0, in_pad0 - in_dim0)))

    kernel = _make_fused_kan_kernel(degree, out_dims)

    in_specs = [pl.BlockSpec((tb, in_pad0), lambda i: (i, 0))]
    flat_params = []
    flops = 0
    transcend = 0
    param_bytes = 0
    # TODO(synk): if sum of per-layer coef VMEM approaches the v7x scoped
    # limit, add pipeline_mode=pl.Buffered(1) to these grid-invariant param
    # BlockSpecs (or split the layer fusion) to avoid double-buffering them.
    for coef2d, bias, gamma, beta in layers:
        K, Np = coef2d.shape
        in_specs.append(pl.BlockSpec((K, Np), lambda i: (0, 0)))
        in_specs.append(pl.BlockSpec(bias.shape, lambda i: (0, 0)))
        in_specs.append(pl.BlockSpec(gamma.shape, lambda i: (0, 0)))
        in_specs.append(pl.BlockSpec(beta.shape, lambda i: (0, 0)))
        flat_params.extend([coef2d, bias, gamma, beta])
        flops += 2 * Bp * K * Np
        transcend += Bp * (K // degree)  # tanh per (padded) input feature
        param_bytes += (coef2d.size * coef2d.dtype.itemsize
                        + (bias.size + gamma.size + beta.size) * 4)

    bytes_accessed = x.size * 4 + param_bytes + Bp * out_pad_last * 4

    out = pl.pallas_call(
        kernel,
        out_shape=jax.ShapeDtypeStruct((Bp, out_pad_last), jnp.float32),
        grid_spec=pltpu.PrefetchScalarGridSpec(
            num_scalar_prefetch=0,
            grid=(Bp // tb,),
            in_specs=in_specs,
            out_specs=pl.BlockSpec((tb, out_pad_last), lambda i: (i, 0)),
        ),
        compiler_params=pltpu.CompilerParams(
            dimension_semantics=("parallel",),
            vmem_limit_bytes=32 * 1024 * 1024,
        ),
        cost_estimate=pl.CostEstimate(
            flops=int(flops),
            transcendentals=int(transcend),
            bytes_accessed=int(bytes_accessed)),
    )(x, *flat_params)
    return out[:B, :out_dims[-1]]


def _reference_forward(x, params, *, degree):
    """Pure-JAX reference mirroring the PyTorch module (for verification)."""
    in_dim0 = params[0][0].shape[0]
    x = x.reshape(-1, in_dim0)
    ar = jnp.arange(degree + 1, dtype=jnp.float32)
    for coeffs, gamma, beta in params:
        t = jnp.tanh(x)
        t = jnp.clip(t, -1 + 1e-6, 1 - 1e-6)
        t = jnp.arccos(t)[..., None] * ar          # (B, in, D+1)
        t = jnp.cos(t)
        y = jnp.einsum('bid,iod->bo', t, coeffs)
        mean = jnp.mean(y, axis=-1, keepdims=True)
        var = jnp.mean((y - mean) ** 2, axis=-1, keepdims=True)
        x = (y - mean) / jnp.sqrt(var + 1e-5) * gamma + beta
    return x


if __name__ == "__main__":
    degree = 4
    layers_hidden = [16, 32, 16]
    batch = 512   # auto tile = 64 -> 8 grid steps (>= 3-4 per v7x TensorCore)

    key = jax.random.PRNGKey(0)
    key, kx = jax.random.split(key)
    x = jax.random.normal(kx, (batch, layers_hidden[0]), dtype=jnp.float32)

    params = init_cheby_kan_params(key, layers_hidden, degree)
    ref = _reference_forward(x, params, degree=degree)

    # f32 coefficient path (tight tolerance).
    prepped = prepare_params(params)            # one-time layout work
    out = jax.block_until_ready(cheby_kan_forward(x, prepped))
    assert out.shape == (batch, layers_hidden[-1])
    assert jnp.allclose(out, ref, atol=3e-4, rtol=3e-4), \
        float(jnp.max(jnp.abs(out - ref)))

    # bf16 matmul-operand path (f32 accumulation / elementwise; loose tol).
    prepped_bf16 = prepare_params(params, coef_dtype=jnp.bfloat16)
    out_bf16 = jax.block_until_ready(cheby_kan_forward(x, prepped_bf16))
    bf16_err = float(jnp.max(jnp.abs(out_bf16 - ref)))
    assert bf16_err < 2e-1, bf16_err

    print("KERNEL_OK")
</pallas_src>

<mosaic_0001>
module attributes {stable_mosaic.version = 11 : i64} {
  func.func @kernel(%arg0: i32, %arg1: memref<64x128xf32, #tpu.memory_space<vmem>>, %arg2: memref<512x128xf32, #tpu.memory_space<vmem>>, %arg3: memref<1x128xf32, #tpu.memory_space<vmem>>, %arg4: memref<1x128xf32, #tpu.memory_space<vmem>>, %arg5: memref<1x128xf32, #tpu.memory_space<vmem>>, %arg6: memref<512x128xf32, #tpu.memory_space<vmem>>, %arg7: memref<1x128xf32, #tpu.memory_space<vmem>>, %arg8: memref<1x128xf32, #tpu.memory_space<vmem>>, %arg9: memref<1x128xf32, #tpu.memory_space<vmem>>, %arg10: memref<64x128xf32, #tpu.memory_space<vmem>>) attributes {dimension_semantics = [#tpu.dimension_semantics<parallel>], iteration_bounds = array<i64: 8>, scalar_prefetch = 0 : i64, scratch_operands = 0 : i64, tpu.core_type = #tpu.core_type<tc>, window_params = [{transform_indices = @transform_0, window_bounds = array<i64: 64, 128>}, {pipeline_mode = #tpu.pipeline_mode<synchronous>, transform_indices = @transform_1, window_bounds = array<i64: 512, 128>}, {pipeline_mode = #tpu.pipeline_mode<synchronous>, transform_indices = @transform_2, window_bounds = array<i64: 1, 128>}, {pipeline_mode = #tpu.pipeline_mode<synchronous>, transform_indices = @transform_3, window_bounds = array<i64: 1, 128>}, {pipeline_mode = #tpu.pipeline_mode<synchronous>, transform_indices = @transform_4, window_bounds = array<i64: 1, 128>}, {pipeline_mode = #tpu.pipeline_mode<synchronous>, transform_indices = @transform_5, window_bounds = array<i64: 512, 128>}, {pipeline_mode = #tpu.pipeline_mode<synchronous>, transform_indices = @transform_6, window_bounds = array<i64: 1, 128>}, {pipeline_mode = #tpu.pipeline_mode<synchronous>, transform_indices = @transform_7, window_bounds = array<i64: 1, 128>}, {pipeline_mode = #tpu.pipeline_mode<synchronous>, transform_indices = @transform_8, window_bounds = array<i64: 1, 128>}, {transform_indices = @transform_9, window_bounds = array<i64: 64, 128>}]} {
    %c0 = arith.constant 0 : index
    %c0_0 = arith.constant 0 : index
    %0 = vector.load %arg1[%c0, %c0_0] : memref<64x128xf32, #tpu.memory_space<vmem>>, vector<64x128xf32>
    %1 = math.tanh %0 : vector<64x128xf32>
    %cst = arith.constant 1.000000e+00 : f32
    %2 = vector.broadcast %cst : f32 to vector<64x128xf32>
    %cst_1 = arith.constant 2.000000e+00 : f32
    %3 = vector.broadcast %cst_1 : f32 to vector<64x128xf32>
    %4 = arith.mulf %3, %1 : vector<64x128xf32>
    %5 = arith.mulf %4, %1 : vector<64x128xf32>
    %6 = arith.subf %5, %2 : vector<64x128xf32>
    %cst_2 = arith.constant 2.000000e+00 : f32
    %7 = vector.broadcast %cst_2 : f32 to vector<64x128xf32>
    %8 = arith.mulf %7, %1 : vector<64x128xf32>
    %9 = arith.mulf %8, %6 : vector<64x128xf32>
    %10 = arith.subf %9, %1 : vector<64x128xf32>
    %cst_3 = arith.constant 2.000000e+00 : f32
    %11 = vector.broadcast %cst_3 : f32 to vector<64x128xf32>
    %12 = arith.mulf %11, %1 : vector<64x128xf32>
    %13 = arith.mulf %12, %10 : vector<64x128xf32>
    %14 = arith.subf %13, %6 : vector<64x128xf32>
    %15 = tpu.concatenate %1, %6, %10, %14 in 1 : vector<64x128xf32>, vector<64x128xf32>, vector<64x128xf32>, vector<64x128xf32> -> vector<64x512xf32>
    %c0_4 = arith.constant 0 : index
    %c0_5 = arith.constant 0 : index
    %16 = vector.load %arg3[%c0_4, %c0_5] : memref<1x128xf32, #tpu.memory_space<vmem>>, vector<1x128xf32>
    %c0_6 = arith.constant 0 : index
    %c0_7 = arith.constant 0 : index
    %17 = vector.load %arg2[%c0_6, %c0_7] : memref<512x128xf32, #tpu.memory_space<vmem>>, vector<512x128xf32>
    %cst_8 = arith.constant dense<0.000000e+00> : vector<64x128xf32>
    %18 = tpu.matmul %15, %17, %cst_8 {dimension_numbers = #tpu.dot_dimension_numbers<[1], [0], [0], [1], [0, 0, 1, 1], [], []>} : vector<64x512xf32>, vector<512x128xf32>, vector<64x128xf32> -> vector<64x128xf32>
    %19 = vector.broadcast %16 : vector<1x128xf32> to vector<64x128xf32>
    %20 = arith.addf %19, %18 : vector<64x128xf32>
    %cst_9 = arith.constant dense<0.000000e+00> : vector<64xf32>
    %21 = vector.multi_reduction <add>, %20, %cst_9 [1] : vector<64x128xf32> to vector<64xf32>
    %22 = vector.shape_cast %21 : vector<64xf32> to vector<64x1xf32>
    %cst_10 = arith.constant 3.125000e-02 : f32
    %23 = vector.broadcast %cst_10 : f32 to vector<64x1xf32>
    %24 = arith.mulf %22, %23 : vector<64x1xf32>
    %25 = arith.mulf %20, %20 : vector<64x128xf32>
    %cst_11 = arith.constant dense<0.000000e+00> : vector<64xf32>
    %26 = vector.multi_reduction <add>, %25, %cst_11 [1] : vector<64x128xf32> to vector<64xf32>
    %27 = vector.shape_cast %26 : vector<64xf32> to vector<64x1xf32>
    %cst_12 = arith.constant 3.125000e-02 : f32
    %28 = vector.broadcast %cst_12 : f32 to vector<64x1xf32>
    %29 = arith.mulf %27, %28 : vector<64x1xf32>
    %30 = arith.mulf %24, %24 : vector<64x1xf32>
    %31 = arith.subf %29, %30 : vector<64x1xf32>
    %32 = vector.broadcast %24 : vector<64x1xf32> to vector<64x128xf32>
    %33 = arith.subf %20, %32 : vector<64x128xf32>
    %cst_13 = arith.constant 9.99999974E-6 : f32
    %34 = vector.broadcast %cst_13 : f32 to vector<64x1xf32>
    %35 = arith.addf %31, %34 : vector<64x1xf32>
    %36 = math.rsqrt %35 : vector<64x1xf32>
    %37 = vector.broadcast %36 : vector<64x1xf32> to vector<64x128xf32>
    %38 = arith.mulf %33, %37 : vector<64x128xf32>
    %c0_14 = arith.constant 0 : index
    %c0_15 = arith.constant 0 : index
    %39 = vector.load %arg4[%c0_14, %c0_15] : memref<1x128xf32, #tpu.memory_space<vmem>>, vector<1x128xf32>
    %40 = vector.broadcast %39 : vector<1x128xf32> to vector<64x128xf32>
    %41 = arith.mulf %38, %40 : vector<64x128xf32>
    %c0_16 = arith.constant 0 : index
    %c0_17 = arith.constant 0 : index
    %42 = vector.load %arg5[%c0_16, %c0_17] : memref<1x128xf32, #tpu.memory_space<vmem>>, vector<1x128xf32>
    %43 = vector.broadcast %42 : vector<1x128xf32> to vector<64x128xf32>
    %44 = arith.addf %41, %43 : vector<64x128xf32>
    %45 = math.tanh %44 : vector<64x128xf32>
    %cst_18 = arith.constant 1.000000e+00 : f32
    %46 = vector.broadcast %cst_18 : f32 to vector<64x128xf32>
    %cst_19 = arith.constant 2.000000e+00 : f32
    %47 = vector.broadcast %cst_19 : f32 to vector<64x128xf32>
    %48 = arith.mulf %47, %45 : vector<64x128xf32>
    %49 = arith.mulf %48, %45 : vector<64x128xf32>
    %50 = arith.subf %49, %46 : vector<64x128xf32>
    %cst_20 = arith.constant 2.000000e+00 : f32
    %51 = vector.broadcast %cst_20 : f32 to vector<64x128xf32>
    %52 = arith.mulf %51, %45 : vector<64x128xf32>
    %53 = arith.mulf %52, %50 : vector<64x128xf32>
    %54 = arith.subf %53, %45 : vector<64x128xf32>
    %cst_21 = arith.constant 2.000000e+00 : f32
    %55 = vector.broadcast %cst_21 : f32 to vector<64x128xf32>
    %56 = arith.mulf %55, %45 : vector<64x128xf32>
    %57 = arith.mulf %56, %54 : vector<64x128xf32>
    %58 = arith.subf %57, %50 : vector<64x128xf32>
    %59 = tpu.concatenate %45, %50, %54, %58 in 1 : vector<64x128xf32>, vector<64x128xf32>, vector<64x128xf32>, vector<64x128xf32> -> vector<64x512xf32>
    %c0_22 = arith.constant 0 : index
    %c0_23 = arith.constant 0 : index
    %60 = vector.load %arg7[%c0_22, %c0_23] : memref<1x128xf32, #tpu.memory_space<vmem>>, vector<1x128xf32>
    %c0_24 = arith.constant 0 : index
    %c0_25 = arith.constant 0 : index
    %61 = vector.load %arg6[%c0_24, %c0_25] : memref<512x128xf32, #tpu.memory_space<vmem>>, vector<512x128xf32>
    %cst_26 = arith.constant dense<0.000000e+00> : vector<64x128xf32>
    %62 = tpu.matmul %59, %61, %cst_26 {dimension_numbers = #tpu.dot_dimension_numbers<[1], [0], [0], [1], [0, 0, 1, 1], [], []>} : vector<64x512xf32>, vector<512x128xf32>, vector<64x128xf32> -> vector<64x128xf32>
    %63 = vector.broadcast %60 : vector<1x128xf32> to vector<64x128xf32>
    %64 = arith.addf %63, %62 : vector<64x128xf32>
    %cst_27 = arith.constant dense<0.000000e+00> : vector<64xf32>
    %65 = vector.multi_reduction <add>, %64, %cst_27 [1] : vector<64x128xf32> to vector<64xf32>
    %66 = vector.shape_cast %65 : vector<64xf32> to vector<64x1xf32>
    %cst_28 = arith.constant 6.250000e-02 : f32
    %67 = vector.broadcast %cst_28 : f32 to vector<64x1xf32>
    %68 = arith.mulf %66, %67 : vector<64x1xf32>
    %69 = arith.mulf %64, %64 : vector<64x128xf32>
    %cst_29 = arith.constant dense<0.000000e+00> : vector<64xf32>
    %70 = vector.multi_reduction <add>, %69, %cst_29 [1] : vector<64x128xf32> to vector<64xf32>
    %71 = vector.shape_cast %70 : vector<64xf32> to vector<64x1xf32>
    %cst_30 = arith.constant 6.250000e-02 : f32
    %72 = vector.broadcast %cst_30 : f32 to vector<64x1xf32>
    %73 = arith.mulf %71, %72 : vector<64x1xf32>
    %74 = arith.mulf %68, %68 : vector<64x1xf32>
    %75 = arith.subf %73, %74 : vector<64x1xf32>
    %76 = vector.broadcast %68 : vector<64x1xf32> to vector<64x128xf32>
    %77 = arith.subf %64, %76 : vector<64x128xf32>
    %cst_31 = arith.constant 9.99999974E-6 : f32
    %78 = vector.broadcast %cst_31 : f32 to vector<64x1xf32>
    %79 = arith.addf %75, %78 : vector<64x1xf32>
    %80 = math.rsqrt %79 : vector<64x1xf32>
    %81 = vector.broadcast %80 : vector<64x1xf32> to vector<64x128xf32>
    %82 = arith.mulf %77, %81 : vector<64x128xf32>
    %c0_32 = arith.constant 0 : index
    %c0_33 = arith.constant 0 : index
    %83 = vector.load %arg8[%c0_32, %c0_33] : memref<1x128xf32, #tpu.memory_space<vmem>>, vector<1x128xf32>
    %84 = vector.broadcast %83 : vector<1x128xf32> to vector<64x128xf32>
    %85 = arith.mulf %82, %84 : vector<64x128xf32>
    %c0_34 = arith.constant 0 : index
    %c0_35 = arith.constant 0 : index
    %86 = vector.load %arg9[%c0_34, %c0_35] : memref<1x128xf32, #tpu.memory_space<vmem>>, vector<1x128xf32>
    %87 = vector.broadcast %86 : vector<1x128xf32> to vector<64x128xf32>
    %88 = arith.addf %85, %87 : vector<64x128xf32>
    %c0_36 = arith.constant 0 : index
    %c0_37 = arith.constant 0 : index
    %89 = vector.load %arg10[%c0_36, %c0_37] : memref<64x128xf32, #tpu.memory_space<vmem>>, vector<64x128xf32>
    tpu.vector_store %arg10[%c0_36, %c0_37], %88 {strides = array<i32>} : memref<64x128xf32, #tpu.memory_space<vmem>>, vector<64x128xf32>,
    return
  }
  func.func @transform_0(%arg0: i32) -> (i32, i32) {
    %c0_i32 = arith.constant 0 : i32
    %c0_i32_0 = arith.constant 0 : i32
    return %arg0, %c0_i32 : i32, i32
  }
  func.func @transform_1(%arg0: i32) -> (i32, i32) {
    %c0_i32 = arith.constant 0 : i32
    %c0_i32_0 = arith.constant 0 : i32
    %c0_i32_1 = arith.constant 0 : i32
    return %c0_i32, %c0_i32_0 : i32, i32
  }
  func.func @transform_2(%arg0: i32) -> (i32, i32) {
    %c0_i32 = arith.constant 0 : i32
    %c0_i32_0 = arith.constant 0 : i32
    %c0_i32_1 = arith.constant 0 : i32
    return %c0_i32, %c0_i32_0 : i32, i32
  }
  func.func @transform_3(%arg0: i32) -> (i32, i32) {
    %c0_i32 = arith.constant 0 : i32
    %c0_i32_0 = arith.constant 0 : i32
    %c0_i32_1 = arith.constant 0 : i32
    return %c0_i32, %c0_i32_0 : i32, i32
  }
  func.func @transform_4(%arg0: i32) -> (i32, i32) {
    %c0_i32 = arith.constant 0 : i32
    %c0_i32_0 = arith.constant 0 : i32
    %c0_i32_1 = arith.constant 0 : i32
    return %c0_i32, %c0_i32_0 : i32, i32
  }
  func.func @transform_5(%arg0: i32) -> (i32, i32) {
    %c0_i32 = arith.constant 0 : i32
    %c0_i32_0 = arith.constant 0 : i32
    %c0_i32_1 = arith.constant 0 : i32
    return %c0_i32, %c0_i32_0 : i32, i32
  }
  func.func @transform_6(%arg0: i32) -> (i32, i32) {
    %c0_i32 = arith.constant 0 : i32
    %c0_i32_0 = arith.constant 0 : i32
    %c0_i32_1 = arith.constant 0 : i32
    return %c0_i32, %c0_i32_0 : i32, i32
  }
  func.func @transform_7(%arg0: i32) -> (i32, i32) {
    %c0_i32 = arith.constant 0 : i32
    %c0_i32_0 = arith.constant 0 : i32
    %c0_i32_1 = arith.constant 0 : i32
    return %c0_i32, %c0_i32_0 : i32, i32
  }
  func.func @transform_8(%arg0: i32) -> (i32, i32) {
    %c0_i32 = arith.constant 0 : i32
    %c0_i32_0 = arith.constant 0 : i32
    %c0_i32_1 = arith.constant 0 : i32
    return %c0_i32, %c0_i32_0 : i32, i32
  }
  func.func @transform_9(%arg0: i32) -> (i32, i32) {
    %c0_i32 = arith.constant 0 : i32
    %c0_i32_0 = arith.constant 0 : i32
    return %arg0, %c0_i32 : i32, i32
  }
}

</mosaic_0001>

<llo_original>
// kernel: tpu_custom_call.1
$region0: #{tpu_custom_call.1}
  #allocation0 [shape = 'u32[]', space=smem, size = 0x4, offset = 0x4, fixed_abs, tag = 'smem constant byte address 0x4 - core index']
  #allocation1 [shape = 'u32[144,128]{1,0:T(1,128)}', space=vmem, size = 0x12000, scoped, tag = 'internal scratch']
  %s0 = inlined_call_operand.hbm [shape: f32[512,128], index: 0, kind: input, shape index: {}]
  %s1 = inlined_call_operand.hbm [shape: f32[512,128], index: 1, kind: input, shape index: {}]
  %s2 = inlined_call_operand.vmem [shape: f32[1,128], index: 2, kind: input, shape index: {}]
  %s3 = inlined_call_operand.vmem [shape: f32[1,128], index: 3, kind: input, shape index: {}]
  %s4 = inlined_call_operand.vmem [shape: f32[1,128], index: 4, kind: input, shape index: {}]
  %s5 = inlined_call_operand.hbm [shape: f32[512,128], index: 5, kind: input, shape index: {}]
  %s6 = inlined_call_operand.vmem [shape: f32[1,128], index: 6, kind: input, shape index: {}]
  %s7 = inlined_call_operand.vmem [shape: f32[1,128], index: 7, kind: input, shape index: {}]
  %s8 = inlined_call_operand.vmem [shape: f32[1,128], index: 8, kind: input, shape index: {}]
  %s9 = inlined_call_operand.hbm [shape: f32[512,128], index: 9, kind: output, shape index: {}]
  %s10 = sld [smem:[#allocation0]]
  $region81: #{tpu_custom_call.1} parent=0
    _
  %s12 = ssub.s32 1, %s10
  %s13 = scalar_select 0, %s12, %s10
  $region1: #{tpu_custom_call.1} parent=0
    #allocation2 [shape = 'u8[65536]{0}', space=vmem, size = 0x10000, scoped, tag = 'input window, operand 0']
    #allocation3 [shape = 's32[2]{0}', space=sflag, size = 0x8, scoped, tag = 'scoped memory for tpu_custom_call.1']
    #allocation4 [shape = 's32[2]{0}', space=sflag, size = 0x8, scoped, tag = 'scoped memory for tpu_custom_call.1']
    #allocation5 [shape = 'u8[262144]{0}', space=vmem, size = 0x40000, scoped, tag = 'input window, operand 1, single buffered']
    #allocation6 [shape = 's32[1]{0}', space=sflag, size = 0x4, scoped, tag = 'scoped memory for tpu_custom_call.1']
    #allocation7 [shape = 'u8[262144]{0}', space=vmem, size = 0x40000, scoped, tag = 'input window, operand 5, single buffered']
    #allocation8 [shape = 'u8[65536]{0}', space=vmem, size = 0x10000, scoped, tag = 'output window, operand 0']
    %14 = vsyncpa [#allocation3], 0
    %s15 = scalar_lea.sflag [#allocation3], 1
    %16 = vsyncpa %s15, 0
    %17 = vsyncpa [#allocation6], 0
    %18 = vsyncpa [#allocation4], 0
    %s19 = scalar_lea.sflag [#allocation4], 1
    %20 = vsyncpa %s19, 0
    loop: start=0, step=1, limit=10
    $region2: #{tpu_custom_call.1} parent=1 // loop_pre_header
      _
    $region3: #{tpu_custom_call.1} parent=1 // loop_header
      %s22 = sphi 0, %s26
      %p23 = scmp.ge.s32.totalorder %s22, 10
      %s32 = sphi 0, %s34
      %s35 = sphi 0, %s32
      %s36 = sphi 0, %s35
      %s52 = sphi 0, %s36
      %s56 = sphi 0, %s56
      %s58 = sphi 0, %s56
      %s59 = sphi 0, %s58
      %s73 = sphi 0, %s59
      %s77 = sphi 0, %s77
      %s79 = sphi 0, %s77
      %s80 = sphi 0, %s79
      %s94 = sphi 0, %s80
      %s98 = sphi 0, %s98
      %s100 = sphi 0, %s98
      %s101 = sphi 0, %s100
      %s115 = sphi 0, %s101
      %s119 = sphi 0, %s119
      %s121 = sphi 0, %s119
      %s122 = sphi 0, %s121
      %s136 = sphi 0, %s122
      %s140 = sphi 0, %s140
      %s142 = sphi 0, %s140
      %s143 = sphi 0, %s142
      %s157 = sphi 0, %s143
      %s161 = sphi 0, %s161
      %s163 = sphi 0, %s161
      %s164 = sphi 0, %s163
      %s178 = sphi 0, %s164
      %s182 = sphi 0, %s182
      %s184 = sphi 0, %s182
      %s185 = sphi 0, %s184
      %s199 = sphi 0, %s185
      %s203 = sphi 0, %s203
      %s205 = sphi 0, %s203
      %s206 = sphi 0, %s205
      %s220 = sphi 0, %s206
      %s226 = sphi 0, %s228
      %s229 = sphi 0, %s226
      %s230 = sphi 0, %s229
      %s246 = sphi 0, %s230
    $region4: #{tpu_custom_call.1} parent=1 // loop_header_branch
      %25 = sbr.rel (%p23) target = $region8
    $region5: #{tpu_custom_call.1} parent=1 // loop_body
      %s27 = ssub.s32 %s22, 1
      %s28 = ssub.s32 %s22, 2
      %s29 = sadd.s32 %s22, 1
      %s30 = ssub.s32 %s22, %s29
      %p31 = scmp.eq.s32.totalorder %s30, 0
      %s33 = sadd.s32 %s32, 1
      %s34 = scalar_select %p31, %s32, %s33
      %p37 = pneg %p31
      %p38 = scmp.eq.s32.totalorder %s22, 7
      %p39 = por %p37, %p38
      %p40 = scmp.ne.s32.totalorder %s32, %s35
      %p41 = scmp.eq.s32.totalorder %s22, 0
      %p42 = por %p40, %p41
      %p43 = scmp.ne.s32.totalorder %s32, %s35
      %p44 = scmp.eq.s32.totalorder %s27, 7
      %p45 = por %p43, %p44
      %p46 = scmp.ne.s32.totalorder %s35, %s36
      %p47 = scmp.eq.s32.totalorder %s27, 0
      %p48 = por %p46, %p47
      %p49 = scmp.ne.s32.totalorder %s35, %s36
      %p50 = scmp.eq.s32.totalorder %s28, 7
      %p51 = por %p49, %p50
      %p53 = scmp.ne.s32.totalorder %s36, %s52
      %p54 = scmp.eq.s32.totalorder %s28, 0
      %p55 = por %p53, %p54
      %s57 = sadd.s32 %s56, 1
      %p60 = scmp.eq.s32.totalorder %s22, 7
      %p61 = scmp.ne.s32.totalorder %s56, %s58
      %p62 = scmp.eq.s32.totalorder %s22, 0
      %p63 = por %p61, %p62
      %p64 = scmp.ne.s32.totalorder %s56, %s58
      %p65 = scmp.eq.s32.totalorder %s27, 7
      %p66 = por %p64, %p65
      %p67 = scmp.ne.s32.totalorder %s58, %s59
      %p68 = scmp.eq.s32.totalorder %s27, 0
      %p69 = por %p67, %p68
      %p70 = scmp.ne.s32.totalorder %s58, %s59
      %p71 = scmp.eq.s32.totalorder %s28, 7
      %p72 = por %p70, %p71
      %p74 = scmp.ne.s32.totalorder %s59, %s73
      %p75 = scmp.eq.s32.totalorder %s28, 0
      %p76 = por %p74, %p75
      %s78 = sadd.s32 %s77, 1
      %p81 = scmp.eq.s32.totalorder %s22, 7
      %p82 = scmp.ne.s32.totalorder %s77, %s79
      %p83 = scmp.eq.s32.totalorder %s22, 0
      %p84 = por %p82, %p83
      %p85 = scmp.ne.s32.totalorder %s77, %s79
      %p86 = scmp.eq.s32.totalorder %s27, 7
      %p87 = por %p85, %p86
      %p88 = scmp.ne.s32.totalorder %s79, %s80
      %p89 = scmp.eq.s32.totalorder %s27, 0
      %p90 = por %p88, %p89
      %p91 = scmp.ne.s32.totalorder %s79, %s80
      %p92 = scmp.eq.s32.totalorder %s28, 7
      %p93 = por %p91, %p92
      %p95 = scmp.ne.s32.totalorder %s80, %s94
      %p96 = scmp.eq.s32.totalorder %s28, 0
      %p97 = por %p95, %p96
      %s99 = sadd.s32 %s98, 1
      %p102 = scmp.eq.s32.totalorder %s22, 7
      %p103 = scmp.ne.s32.totalorder %s98, %s100
      %p104 = scmp.eq.s32.totalorder %s22, 0
      %p105 = por %p103, %p104
      %p106 = scmp.ne.s32.totalorder %s98, %s100
      %p107 = scmp.eq.s32.totalorder %s27, 7
      %p108 = por %p106, %p107
      %p109 = scmp.ne.s32.totalorder %s100, %s101
      %p110 = scmp.eq.s32.totalorder %s27, 0
      %p111 = por %p109, %p110
      %p112 = scmp.ne.s32.totalorder %s100, %s101
      %p113 = scmp.eq.s32.totalorder %s28, 7
      %p114 = por %p112, %p113
      %p116 = scmp.ne.s32.totalorder %s101, %s115
      %p117 = scmp.eq.s32.totalorder %s28, 0
      %p118 = por %p116, %p117
      %s120 = sadd.s32 %s119, 1
      %p123 = scmp.eq.s32.totalorder %s22, 7
      %p124 = scmp.ne.s32.totalorder %s119, %s121
      %p125 = scmp.eq.s32.totalorder %s22, 0
      %p126 = por %p124, %p125
      %p127 = scmp.ne.s32.totalorder %s119, %s121
      %p128 = scmp.eq.s32.totalorder %s27, 7
      %p129 = por %p127, %p128
      %p130 = scmp.ne.s32.totalorder %s121, %s122
      %p131 = scmp.eq.s32.totalorder %s27, 0
      %p132 = por %p130, %p131
      %p133 = scmp.ne.s32.totalorder %s121, %s122
      %p134 = scmp.eq.s32.totalorder %s28, 7
      %p135 = por %p133, %p134
      %p137 = scmp.ne.s32.totalorder %s122, %s136
      %p138 = scmp.eq.s32.totalorder %s28, 0
      %p139 = por %p137, %p138
      %s141 = sadd.s32 %s140, 1
      %p144 = scmp.eq.s32.totalorder %s22, 7
      %p145 = scmp.ne.s32.totalorder %s140, %s142
      %p146 = scmp.eq.s32.totalorder %s22, 0
      %p147 = por %p145, %p146
      %p148 = scmp.ne.s32.totalorder %s140, %s142
      %p149 = scmp.eq.s32.totalorder %s27, 7
      %p150 = por %p148, %p149
      %p151 = scmp.ne.s32.totalorder %s142, %s143
      %p152 = scmp.eq.s32.totalorder %s27, 0
      %p153 = por %p151, %p152
      %p154 = scmp.ne.s32.totalorder %s142, %s143
      %p155 = scmp.eq.s32.totalorder %s28, 7
      %p156 = por %p154, %p155
      %p158 = scmp.ne.s32.totalorder %s143, %s157
      %p159 = scmp.eq.s32.totalorder %s28, 0
      %p160 = por %p158, %p159
      %s162 = sadd.s32 %s161, 1
      %p165 = scmp.eq.s32.totalorder %s22, 7
      %p166 = scmp.ne.s32.totalorder %s161, %s163
      %p167 = scmp.eq.s32.totalorder %s22, 0
      %p168 = por %p166, %p167
      %p169 = scmp.ne.s32.totalorder %s161, %s163
      %p170 = scmp.eq.s32.totalorder %s27, 7
      %p171 = por %p169, %p170
      %p172 = scmp.ne.s32.totalorder %s163, %s164
      %p173 = scmp.eq.s32.totalorder %s27, 0
      %p174 = por %p172, %p173
      %p175 = scmp.ne.s32.totalorder %s163, %s164
      %p176 = scmp.eq.s32.totalorder %s28, 7
      %p177 = por %p175, %p176
      %p179 = scmp.ne.s32.totalorder %s164, %s178
      %p180 = scmp.eq.s32.totalorder %s28, 0
      %p181 = por %p179, %p180
      %s183 = sadd.s32 %s182, 1
      %p186 = scmp.eq.s32.totalorder %s22, 7
      %p187 = scmp.ne.s32.totalorder %s182, %s184
      %p188 = scmp.eq.s32.totalorder %s22, 0
      %p189 = por %p187, %p188
      %p190 = scmp.ne.s32.totalorder %s182, %s184
      %p191 = scmp.eq.s32.totalorder %s27, 7
      %p192 = por %p190, %p191
      %p193 = scmp.ne.s32.totalorder %s184, %s185
      %p194 = scmp.eq.s32.totalorder %s27, 0
      %p195 = por %p193, %p194
      %p196 = scmp.ne.s32.totalorder %s184, %s185
      %p197 = scmp.eq.s32.totalorder %s28, 7
      %p198 = por %p196, %p197
      %p200 = scmp.ne.s32.totalorder %s185, %s199
      %p201 = scmp.eq.s32.totalorder %s28, 0
      %p202 = por %p200, %p201
      %s204 = sadd.s32 %s203, 1
      %p207 = scmp.eq.s32.totalorder %s22, 7
      %p208 = scmp.ne.s32.totalorder %s203, %s205
      %p209 = scmp.eq.s32.totalorder %s22, 0
      %p210 = por %p208, %p209
      %p211 = scmp.ne.s32.totalorder %s203, %s205
      %p212 = scmp.eq.s32.totalorder %s27, 7
      %p213 = por %p211, %p212
      %p214 = scmp.ne.s32.totalorder %s205, %s206
      %p215 = scmp.eq.s32.totalorder %s27, 0
      %p216 = por %p214, %p215
      %p217 = scmp.ne.s32.totalorder %s205, %s206
      %p218 = scmp.eq.s32.totalorder %s28, 7
      %p219 = por %p217, %p218
      %p221 = scmp.ne.s32.totalorder %s206, %s220
      %p222 = scmp.eq.s32.totalorder %s28, 0
      %p223 = por %p221, %p222
      %s224 = ssub.s32 %s22, %s29
      %p225 = scmp.eq.s32.totalorder %s224, 0
      %s227 = sadd.s32 %s226, 1
      %s228 = scalar_select %p225, %s226, %s227
      %p231 = pneg %p225
      %p232 = scmp.eq.s32.totalorder %s22, 7
      %p233 = por %p231, %p232
      %p234 = scmp.ne.s32.totalorder %s226, %s229
      %p235 = scmp.eq.s32.totalorder %s22, 0
      %p236 = por %p234, %p235
      %p237 = scmp.ne.s32.totalorder %s226, %s229
      %p238 = scmp.eq.s32.totalorder %s27, 7
      %p239 = por %p237, %p238
      %p240 = scmp.ne.s32.totalorder %s229, %s230
      %p241 = scmp.eq.s32.totalorder %s27, 0
      %p242 = por %p240, %p241
      %p243 = scmp.ne.s32.totalorder %s229, %s230
      %p244 = scmp.eq.s32.totalorder %s28, 7
      %p245 = por %p243, %p244
      %p247 = scmp.ne.s32.totalorder %s230, %s246
      %p248 = scmp.eq.s32.totalorder %s28, 0
      %p249 = por %p247, %p248
      %p250 = scmp.le.s32.totalorder 1, %s22
      %p251 = scmp.lt.s32.totalorder %s22, 9
      %p252 = pnand %p250, %p251
      %p253 = pneg %p252
      // Predicated region
      $region9: #{tpu_custom_call.1} parent=5 // pred_check
        _
      $region10: #{tpu_custom_call.1} parent=5 // pred_check_branch
        %255 = sbr.rel (%p252) target = $region12
      $region11: #{tpu_custom_call.1} parent=5 // pred_region
        %s256 = ssub.s32 %s22, 1
        // Predicated region
        $region13: #{tpu_custom_call.1} parent=11 // pred_check
          %p257 = pneg %p69
        $region14: #{tpu_custom_call.1} parent=11 // pred_check_branch
          %259 = sbr.rel (%p257) target = $region16
        $region15: #{tpu_custom_call.1} parent=11 // pred_region
          %s261 = ssub.s32 8192, 8192
          %262 = vsyncadd [#allocation6], %s261
          %s263 = sshll.u32 [#allocation5], 4
          %s264 = int_to_ptr.vmem [resolvable:$true] %s263
          %269 = dma.hbm_to_vmem [thread:$0]  %s1, 8192, %s264, [#allocation6], 128, 128, 8
        $region16: #{tpu_custom_call.1} parent=11 // pred_fallthru
          _
        // Predicated region
        $region17: #{tpu_custom_call.1} parent=11 // pred_check
          %p270 = pneg %p90
        $region18: #{tpu_custom_call.1} parent=11 // pred_check_branch
          %272 = sbr.rel (%p270) target = $region20
        $region19: #{tpu_custom_call.1} parent=11 // pred_region
          _
        $region20: #{tpu_custom_call.1} parent=11 // pred_fallthru
          _
        // Predicated region
        $region21: #{tpu_custom_call.1} parent=11 // pred_check
          %p273 = pneg %p111
        $region22: #{tpu_custom_call.1} parent=11 // pred_check_branch
          %275 = sbr.rel (%p273) target = $region24
        $region23: #{tpu_custom_call.1} parent=11 // pred_region
          _
        $region24: #{tpu_custom_call.1} parent=11 // pred_fallthru
          _
        // Predicated region
        $region25: #{tpu_custom_call.1} parent=11 // pred_check
          %p276 = pneg %p132
        $region26: #{tpu_custom_call.1} parent=11 // pred_check_branch
          %278 = sbr.rel (%p276) target = $region28
        $region27: #{tpu_custom_call.1} parent=11 // pred_region
          _
        $region28: #{tpu_custom_call.1} parent=11 // pred_fallthru
          _
        // Predicated region
        $region29: #{tpu_custom_call.1} parent=11 // pred_check
          %p279 = pneg %p153
        $region30: #{tpu_custom_call.1} parent=11 // pred_check_branch
          %281 = sbr.rel (%p279) target = $region32
        $region31: #{tpu_custom_call.1} parent=11 // pred_region
          %s283 = ssub.s32 8192, 8192
          %284 = vsyncadd [#allocation6], %s283
          %s285 = sshll.u32 [#allocation7], 4
          %s286 = int_to_ptr.vmem [resolvable:$true] %s285
          %291 = dma.hbm_to_vmem [thread:$0]  %s5, 8192, %s286, [#allocation6], 128, 128, 8
        $region32: #{tpu_custom_call.1} parent=11 // pred_fallthru
          _
        // Predicated region
        $region33: #{tpu_custom_call.1} parent=11 // pred_check
          %p292 = pneg %p174
        $region34: #{tpu_custom_call.1} parent=11 // pred_check_branch
          %294 = sbr.rel (%p292) target = $region36
        $region35: #{tpu_custom_call.1} parent=11 // pred_region
          _
        $region36: #{tpu_custom_call.1} parent=11 // pred_fallthru
          _
        // Predicated region
        $region37: #{tpu_custom_call.1} parent=11 // pred_check
          %p295 = pneg %p195
        $region38: #{tpu_custom_call.1} parent=11 // pred_check_branch
          %297 = sbr.rel (%p295) target = $region40
        $region39: #{tpu_custom_call.1} parent=11 // pred_region
          _
        $region40: #{tpu_custom_call.1} parent=11 // pred_fallthru
          _
        // Predicated region
        $region41: #{tpu_custom_call.1} parent=11 // pred_check
          %p298 = pneg %p216
        $region42: #{tpu_custom_call.1} parent=11 // pred_check_branch
          %300 = sbr.rel (%p298) target = $region44
        $region43: #{tpu_custom_call.1} parent=11 // pred_region
          _
        $region44: #{tpu_custom_call.1} parent=11 // pred_fallthru
          _
      $region12: #{tpu_custom_call.1} parent=5 // pred_fallthru
        _
      %p301 = scmp.lt.s32.totalorder %s22, 8
      // Predicated region
      $region45: #{tpu_custom_call.1} parent=5 // pred_check
        %p302 = pneg %p301
      $region46: #{tpu_custom_call.1} parent=5 // pred_check_branch
        %304 = sbr.rel (%p302) target = $region48
      $region47: #{tpu_custom_call.1} parent=5 // pred_region
        // Predicated region
        $region49: #{tpu_custom_call.1} parent=47 // pred_check
          %p305 = pneg %p42
        $region50: #{tpu_custom_call.1} parent=47 // pred_check_branch
          %307 = sbr.rel (%p305) target = $region52
        $region51: #{tpu_custom_call.1} parent=47 // pred_region
          %s308 = sand.u32 %s32, 1
          %s309 = scalar_lea.sflag [#allocation3], %s308
          %s310 = sand.u32 %s32, 1
          %s311 = smul.addr %s310, 64
          %s312 = scalar_lea.vmem [#allocation2], %s311
          %s313 = smul.u32 8, %s22
          %s315 = ssub.s32 1024, 1024
          %316 = vsyncadd %s309, %s315
          %s317 = smul.addr %s313, 128
          %s318 = scalar_lea.hbm %s0, %s317
          %s319 = sshll.u32 %s312, 4
          %s320 = int_to_ptr.vmem [resolvable:$true] %s319
          %325 = dma.hbm_to_vmem [thread:$0]  %s318, 1024, %s320, %s309, 128, 128, 8
        $region52: #{tpu_custom_call.1} parent=47 // pred_fallthru
          _
      $region48: #{tpu_custom_call.1} parent=5 // pred_fallthru
        _
      %p326 = scmp.le.s32.totalorder 1, %s22
      %p327 = scmp.lt.s32.totalorder %s22, 9
      %p328 = pnand %p326, %p327
      %p329 = pneg %p328
      // Predicated region
      $region53: #{tpu_custom_call.1} parent=5 // pred_check
        _
      $region54: #{tpu_custom_call.1} parent=5 // pred_check_branch
        %331 = sbr.rel (%p328) target = $region56
      $region55: #{tpu_custom_call.1} parent=5 // pred_region
        %s332 = ssub.s32 %s22, 1
        %s333 = sand.u32 %s35, 1
        %s334 = scalar_lea.sflag [#allocation3], %s333
        %s335 = sand.u32 %s35, 1
        %s336 = smul.addr %s335, 64
        %s337 = scalar_lea.vmem [#allocation2], %s336
        // Predicated region
        $region57: #{tpu_custom_call.1} parent=55 // pred_check
          %p338 = pneg %p48
        $region58: #{tpu_custom_call.1} parent=55 // pred_check_branch
          %340 = sbr.rel (%p338) target = $region60
        $region59: #{tpu_custom_call.1} parent=55 // pred_region
          %341 = dma.done %s334, 1024
        $region60: #{tpu_custom_call.1} parent=55 // pred_fallthru
          _
        // Predicated region
        $region61: #{tpu_custom_call.1} parent=55 // pred_check
          %p342 = pneg %p69
        $region62: #{tpu_custom_call.1} parent=55 // pred_check_branch
          %344 = sbr.rel (%p342) target = $region64
        $region63: #{tpu_custom_call.1} parent=55 // pred_region
          %345 = dma.done [#allocation6], 8192
        $region64: #{tpu_custom_call.1} parent=55 // pred_fallthru
          _
        // Predicated region
        $region65: #{tpu_custom_call.1} parent=55 // pred_check
          %p346 = pneg %p153
        $region66: #{tpu_custom_call.1} parent=55 // pred_check_branch
          %348 = sbr.rel (%p346) target = $region68
        $region67: #{tpu_custom_call.1} parent=55 // pred_region
          %349 = dma.done [#allocation6], 8192
        $region68: #{tpu_custom_call.1} parent=55 // pred_fallthru
          _
        %s350 = sand.u32 %s35, 1
        %s351 = scalar_lea.sflag [#allocation3], %s350
        %s352 = sand.u32 %s35, 1
        %s353 = smul.addr %s352, 64
        %s354 = scalar_lea.vmem [#allocation2], %s353
        %p355 = pneg %p48
        %p356 = pneg %p45
        %p357 = pneg %p69
        %p358 = pneg %p66
        %p359 = pneg %p90
        %p360 = pneg %p87
        %p361 = pneg %p111
        %p362 = pneg %p108
        %p363 = pneg %p132
        %p364 = pneg %p129
        %p365 = pneg %p153
        %p366 = pneg %p150
        %p367 = pneg %p174
        %p368 = pneg %p171
        %p369 = pneg %p195
        %p370 = pneg %p192
        %p371 = pneg %p216
        %p372 = pneg %p213
        %p373 = pneg %p242
        %p374 = pneg %p239
        %s375 = sand.u32 %s229, 1
        %s376 = scalar_lea.sflag [#allocation4], %s375
        %s377 = sand.u32 %s229, 1
        %s378 = smul.addr %s377, 64
        %s379 = scalar_lea.vmem [#allocation8], %s378
        %s380 = smul.u32 8, %s27
        %s381 = smul.u32 8, %s27
        %v382 = vld [vmem:[%s337] sm:$0xff]
        %v383 = vld [vmem:[%s337 + $0x8] sm:$0xff]
        %v384 = vld [vmem:[%s337 + $0x10] sm:$0xff]
        %v385 = vld [vmem:[%s337 + $0x18] sm:$0xff]
        %v386 = vld [vmem:[%s337 + $0x20] sm:$0xff]
        %v387 = vld [vmem:[%s337 + $0x28] sm:$0xff]
        %v388 = vld [vmem:[%s337 + $0x30] sm:$0xff]
        %v389 = vld [vmem:[%s337 + $0x38] sm:$0xff]
        %v390 = vtanh.pop %v382
        %v391 = vtanh.pop %v383
        %v392 = vtanh.pop %v384
        %v393 = vtanh.pop %v385
        %v394 = vtanh.pop %v386
        %v395 = vtanh.pop %v387
        %v396 = vtanh.pop %v388
        %v397 = vtanh.pop %v389
        %v398 = vmul.f32 %v390, 2.0
        %v399 = vmul.f32 %v391, 2.0
        %v400 = vmul.f32 %v392, 2.0
        %v401 = vmul.f32 %v393, 2.0
        %v402 = vmul.f32 %v394, 2.0
        %v403 = vmul.f32 %v395, 2.0
        %v404 = vmul.f32 %v396, 2.0
        %v405 = vmul.f32 %v397, 2.0
        %v406 = vmul.f32 %v398, %v390
        %v407 = vmul.f32 %v399, %v391
        %v408 = vmul.f32 %v400, %v392
        %v409 = vmul.f32 %v401, %v393
        %v410 = vmul.f32 %v402, %v394
        %v411 = vmul.f32 %v403, %v395
        %v412 = vmul.f32 %v404, %v396
        %v413 = vmul.f32 %v405, %v397
        %v414 = vsub.f32 %v406, 1.0
        %v415 = vsub.f32 %v407, 1.0
        %v416 = vsub.f32 %v408, 1.0
        %v417 = vsub.f32 %v409, 1.0
        %v418 = vsub.f32 %v410, 1.0
        %v419 = vsub.f32 %v411, 1.0
        %v420 = vsub.f32 %v412, 1.0
        %v421 = vsub.f32 %v413, 1.0
        %v422 = vmul.f32 %v398, %v414
        %v423 = vmul.f32 %v399, %v415
        %v424 = vmul.f32 %v400, %v416
        %v425 = vmul.f32 %v401, %v417
        %v426 = vmul.f32 %v402, %v418
        %v427 = vmul.f32 %v403, %v419
        %v428 = vmul.f32 %v404, %v420
        %v429 = vmul.f32 %v405, %v421
        %v430 = vsub.f32 %v422, %v390
        %v431 = vsub.f32 %v423, %v391
        %v432 = vsub.f32 %v424, %v392
        %v433 = vsub.f32 %v425, %v393
        %v434 = vsub.f32 %v426, %v394
        %v435 = vsub.f32 %v427, %v395
        %v436 = vsub.f32 %v428, %v396
        %v437 = vsub.f32 %v429, %v397
        %v438 = vmul.f32 %v398, %v430
        %v439 = vmul.f32 %v399, %v431
        %v440 = vmul.f32 %v400, %v432
        %v441 = vmul.f32 %v401, %v433
        %v442 = vmul.f32 %v402, %v434
        %v443 = vmul.f32 %v403, %v435
        %v444 = vmul.f32 %v404, %v436
        %v445 = vmul.f32 %v405, %v437
        %v446 = vsub.f32 %v438, %v414
        %v447 = vsub.f32 %v439, %v415
        %v448 = vsub.f32 %v440, %v416
        %v449 = vsub.f32 %v441, %v417
        %v450 = vsub.f32 %v442, %v418
        %v451 = vsub.f32 %v443, %v419
        %v452 = vsub.f32 %v444, %v420
        %v453 = vsub.f32 %v445, %v421
        %v454 = vld [vmem:[%s2] sm:$0x1]
        %v455 = vld [vmem:[#allocation5] sm:$0xff]
        %v456 = vld [vmem:[#allocation5 + $0x8] sm:$0xff]
        %v457 = vld [vmem:[#allocation5 + $0x10] sm:$0xff]
        %v458 = vld [vmem:[#allocation5 + $0x18] sm:$0xff]
        %v459 = vld [vmem:[#allocation5 + $0x20] sm:$0xff]
        %v460 = vld [vmem:[#allocation5 + $0x28] sm:$0xff]
        %v461 = vld [vmem:[#allocation5 + $0x30] sm:$0xff]
        %v462 = vld [vmem:[#allocation5 + $0x38] sm:$0xff]
        %v463 = vld [vmem:[#allocation5 + $0x40] sm:$0xff]
        %v464 = vld [vmem:[#allocation5 + $0x48] sm:$0xff]
        %v465 = vld [vmem:[#allocation5 + $0x50] sm:$0xff]
        %v466 = vld [vmem:[#allocation5 + $0x58] sm:$0xff]
        %v467 = vld [vmem:[#allocation5 + $0x60] sm:$0xff]
        %v468 = vld [vmem:[#allocation5 + $0x68] sm:$0xff]
        %v469 = vld [vmem:[#allocation5 + $0x70] sm:$0xff]
        %v470 = vld [vmem:[#allocation5 + $0x78] sm:$0xff]
        %v471 = vld [vmem:[#allocation5 + $0x80] sm:$0xff]
        %v472 = vld [vmem:[#allocation5 + $0x88] sm:$0xff]
        %v473 = vld [vmem:[#allocation5 + $0x90] sm:$0xff]
        %v474 = vld [vmem:[#allocation5 + $0x98] sm:$0xff]
        %v475 = vld [vmem:[#allocation5 + $0xa0] sm:$0xff]
        %v476 = vld [vmem:[#allocation5 + $0xa8] sm:$0xff]
        %v477 = vld [vmem:[#allocation5 + $0xb0] sm:$0xff]
        %v478 = vld [vmem:[#allocation5 + $0xb8] sm:$0xff]
        %v479 = vld [vmem:[#allocation5 + $0xc0] sm:$0xff]
        %v480 = vld [vmem:[#allocation5 + $0xc8] sm:$0xff]
        %v481 = vld [vmem:[#allocation5 + $0xd0] sm:$0xff]
        %v482 = vld [vmem:[#allocation5 + $0xd8] sm:$0xff]
        %v483 = vld [vmem:[#allocation5 + $0xe0] sm:$0xff]
        %v484 = vld [vmem:[#allocation5 + $0xe8] sm:$0xff]
        %v485 = vld [vmem:[#allocation5 + $0xf0] sm:$0xff]
        %v486 = vld [vmem:[#allocation5 + $0xf8] sm:$0xff]
        %v487 = vld [vmem:[#allocation5 + $0x100] sm:$0xff]
        %v488 = vld [vmem:[#allocation5 + $0x108] sm:$0xff]
        %v489 = vld [vmem:[#allocation5 + $0x110] sm:$0xff]
        %v490 = vld [vmem:[#allocation5 + $0x118] sm:$0xff]
        %v491 = vld [vmem:[#allocation5 + $0x120] sm:$0xff]
        %v492 = vld [vmem:[#allocation5 + $0x128] sm:$0xff]
        %v493 = vld [vmem:[#allocation5 + $0x130] sm:$0xff]
        %v494 = vld [vmem:[#allocation5 + $0x138] sm:$0xff]
        %v495 = vld [vmem:[#allocation5 + $0x140] sm:$0xff]
        %v496 = vld [vmem:[#allocation5 + $0x148] sm:$0xff]
        %v497 = vld [vmem:[#allocation5 + $0x150] sm:$0xff]
        %v498 = vld [vmem:[#allocation5 + $0x158] sm:$0xff]
        %v499 = vld [vmem:[#allocation5 + $0x160] sm:$0xff]
        %v500 = vld [vmem:[#allocation5 + $0x168] sm:$0xff]
        %v501 = vld [vmem:[#allocation5 + $0x170] sm:$0xff]
        %v502 = vld [vmem:[#allocation5 + $0x178] sm:$0xff]
        %v503 = vld [vmem:[#allocation5 + $0x180] sm:$0xff]
        %v504 = vld [vmem:[#allocation5 + $0x188] sm:$0xff]
        %v505 = vld [vmem:[#allocation5 + $0x190] sm:$0xff]
        %v506 = vld [vmem:[#allocation5 + $0x198] sm:$0xff]
        %v507 = vld [vmem:[#allocation5 + $0x1a0] sm:$0xff]
        %v508 = vld [vmem:[#allocation5 + $0x1a8] sm:$0xff]
        %v509 = vld [vmem:[#allocation5 + $0x1b0] sm:$0xff]
        %v510 = vld [vmem:[#allocation5 + $0x1b8] sm:$0xff]
        %v511 = vld [vmem:[#allocation5 + $0x1c0] sm:$0xff]
        %v512 = vld [vmem:[#allocation5 + $0x1c8] sm:$0xff]
        %v513 = vld [vmem:[#allocation5 + $0x1d0] sm:$0xff]
        %v514 = vld [vmem:[#allocation5 + $0x1d8] sm:$0xff]
        %v515 = vld [vmem:[#allocation5 + $0x1e0] sm:$0xff]
        %v516 = vld [vmem:[#allocation5 + $0x1e8] sm:$0xff]
        %v517 = vld [vmem:[#allocation5 + $0x1f0] sm:$0xff]
        %v518 = vld [vmem:[#allocation5 + $0x1f8] sm:$0xff]
        %519 = vmatprep.subr.mxu0 0.0
        %520 = vmatpush1.msra.mxu0 %v455
        %521 = vmatprep.subr.mxu0 0.0
        %522 = vmatpush1.msra.mxu0 %v456
        %523 = vmatprep.subr.mxu0 0.0
        %524 = vmatpush1.msra.mxu0 %v457
        %525 = vmatprep.subr.mxu0 0.0
        %526 = vmatpush1.msra.mxu0 %v458
        %527 = vmatprep.subr.mxu0 0.0
        %528 = vmatpush1.msra.mxu0 %v459
        %529 = vmatprep.subr.mxu0 0.0
        %530 = vmatpush1.msra.mxu0 %v460
        %531 = vmatprep.subr.mxu0 0.0
        %532 = vmatpush1.msra.mxu0 %v461
        %533 = vmatprep.subr.mxu0 0.0
        %534 = vmatpush1.msra.mxu0 %v462
        %535 = vmatprep.subr.mxu0 0.0
        %536 = vmatpush1.msra.mxu0 %v463
        %537 = vmatprep.subr.mxu0 0.0
        %538 = vmatpush1.msra.mxu0 %v464
        %539 = vmatprep.subr.mxu0 0.0
        %540 = vmatpush1.msra.mxu0 %v465
        %541 = vmatprep.subr.mxu0 0.0
        %542 = vmatpush1.msra.mxu0 %v466
        %543 = vmatprep.subr.mxu0 0.0
        %544 = vmatpush1.msra.mxu0 %v467
        %545 = vmatprep.subr.mxu0 0.0
        %546 = vmatpush1.msra.mxu0 %v468
        %547 = vmatprep.subr.mxu0 0.0
        %548 = vmatpush1.msra.mxu0 %v469
        %549 = vmatprep.subr.mxu0 0.0
        %550 = vmatpush1.msra.mxu0 %v470
        %551 = vmatprep.subr.mxu0 0.0
        %552 = vmatpush1.msra.mxu0 %v471
        %553 = vmatprep.subr.mxu0 0.0
        %554 = vmatpush1.msra.mxu0 %v472
        %555 = vmatprep.subr.mxu0 0.0
        %556 = vmatpush1.msra.mxu0 %v473
        %557 = vmatprep.subr.mxu0 0.0
        %558 = vmatpush1.msra.mxu0 %v474
        %559 = vmatprep.subr.mxu0 0.0
        %560 = vmatpush1.msra.mxu0 %v475
        %561 = vmatprep.subr.mxu0 0.0
        %562 = vmatpush1.msra.mxu0 %v476
        %563 = vmatprep.subr.mxu0 0.0
        %564 = vmatpush1.msra.mxu0 %v477
        %565 = vmatprep.subr.mxu0 0.0
        %566 = vmatpush1.msra.mxu0 %v478
        %567 = vmatprep.subr.mxu0 0.0
        %568 = vmatpush1.msra.mxu0 %v479
        %569 = vmatprep.subr.mxu0 0.0
        %570 = vmatpush1.msra.mxu0 %v480
        %571 = vmatprep.subr.mxu0 0.0
        %572 = vmatpush1.msra.mxu0 %v481
        %573 = vmatprep.subr.mxu0 0.0
        %574 = vmatpush1.msra.mxu0 %v482
        %575 = vmatprep.subr.mxu0 0.0
        %576 = vmatpush1.msra.mxu0 %v483
        %577 = vmatprep.subr.mxu0 0.0
        %578 = vmatpush1.msra.mxu0 %v484
        %579 = vmatprep.subr.mxu0 0.0
        %580 = vmatpush1.msra.mxu0 %v485
        %581 = vmatprep.subr.mxu0 0.0
        %582 = vmatpush1.msra.mxu0 %v486
        %583 = vmatprep.mubr.f32.mxu0 %v414
        %584 = vmatmul.mubr.f32.gmra.mrb[0].mxu0 %v390
        %v585 = vpop.f32.mrb[0].mxu0
        %v586 = vadd.f32 0.0, %v585
        %v587 = vpop.f32.mrb[0].mxu0
        %588 = vmatprep.mubr.f32.mxu0 %v415
        %589 = vmatmul.mubr.f32.gmra.mrb[0].mxu0 %v391
        %v590 = vpop.f32.mrb[0].mxu0
        %v591 = vadd.f32 0.0, %v590
        %v592 = vpop.f32.mrb[0].mxu0
        %593 = vmatprep.mubr.f32.mxu0 %v416
        %594 = vmatmul.mubr.f32.gmra.mrb[0].mxu0 %v392
        %v595 = vpop.f32.mrb[0].mxu0
        %v596 = vadd.f32 0.0, %v595
        %v597 = vpop.f32.mrb[0].mxu0
        %598 = vmatprep.mubr.f32.mxu0 %v417
        %599 = vmatmul.mubr.f32.gmra.mrb[0].mxu0 %v393
        %v600 = vpop.f32.mrb[0].mxu0
        %v601 = vadd.f32 0.0, %v600
        %v602 = vpop.f32.mrb[0].mxu0
        %603 = vmatprep.mubr.f32.mxu0 %v418
        %604 = vmatmul.mubr.f32.gmra.mrb[0].mxu0 %v394
        %v605 = vpop.f32.mrb[0].mxu0
        %v606 = vadd.f32 0.0, %v605
        %v607 = vpop.f32.mrb[0].mxu0
        %608 = vmatprep.mubr.f32.mxu0 %v419
        %609 = vmatmul.mubr.f32.gmra.mrb[0].mxu0 %v395
        %v610 = vpop.f32.mrb[0].mxu0
        %v611 = vadd.f32 0.0, %v610
        %v612 = vpop.f32.mrb[0].mxu0
        %613 = vmatprep.mubr.f32.mxu0 %v420
        %614 = vmatmul.mubr.f32.gmra.mrb[0].mxu0 %v396
        %v615 = vpop.f32.mrb[0].mxu0
        %v616 = vadd.f32 0.0, %v615
        %v617 = vpop.f32.mrb[0].mxu0
        %618 = vmatprep.mubr.f32.mxu0 %v421
        %619 = vmatmul.mubr.f32.gmra.mrb[0].mxu0 %v397
        %v620 = vpop.f32.mrb[0].mxu0
        %v621 = vadd.f32 0.0, %v620
        %v622 = vpop.f32.mrb[0].mxu0
        %623 = vdwg.mxu0
        %624 = vmatprep.subr.mxu0 0.0
        %625 = vmatpush1.msra.mxu0 %v487
        %626 = vmatprep.subr.mxu0 0.0
        %627 = vmatpush1.msra.mxu0 %v488
        %628 = vmatprep.subr.mxu0 0.0
        %629 = vmatpush1.msra.mxu0 %v489
        %630 = vmatprep.subr.mxu0 0.0
        %631 = vmatpush1.msra.mxu0 %v490
        %632 = vmatprep.subr.mxu0 0.0
        %633 = vmatpush1.msra.mxu0 %v491
        %634 = vmatprep.subr.mxu0 0.0
        %635 = vmatpush1.msra.mxu0 %v492
        %636 = vmatprep.subr.mxu0 0.0
        %637 = vmatpush1.msra.mxu0 %v493
        %638 = vmatprep.subr.mxu0 0.0
        %639 = vmatpush1.msra.mxu0 %v494
        %640 = vmatprep.subr.mxu0 0.0
        %641 = vmatpush1.msra.mxu0 %v495
        %642 = vmatprep.subr.mxu0 0.0
        %643 = vmatpush1.msra.mxu0 %v496
        %644 = vmatprep.subr.mxu0 0.0
        %645 = vmatpush1.msra.mxu0 %v497
        %646 = vmatprep.subr.mxu0 0.0
        %647 = vmatpush1.msra.mxu0 %v498
        %648 = vmatprep.subr.mxu0 0.0
        %649 = vmatpush1.msra.mxu0 %v499
        %650 = vmatprep.subr.mxu0 0.0
        %651 = vmatpush1.msra.mxu0 %v500
        %652 = vmatprep.subr.mxu0 0.0
        %653 = vmatpush1.msra.mxu0 %v501
        %654 = vmatprep.subr.mxu0 0.0
        %655 = vmatpush1.msra.mxu0 %v502
        %656 = vmatprep.subr.mxu0 0.0
        %657 = vmatpush1.msra.mxu0 %v503
        %658 = vmatprep.subr.mxu0 0.0
        %659 = vmatpush1.msra.mxu0 %v504
        %660 = vmatprep.subr.mxu0 0.0
        %661 = vmatpush1.msra.mxu0 %v505
        %662 = vmatprep.subr.mxu0 0.0
        %663 = vmatpush1.msra.mxu0 %v506
        %664 = vmatprep.subr.mxu0 0.0
        %665 = vmatpush1.msra.mxu0 %v507
        %666 = vmatprep.subr.mxu0 0.0
        %667 = vmatpush1.msra.mxu0 %v508
        %668 = vmatprep.subr.mxu0 0.0
        %669 = vmatpush1.msra.mxu0 %v509
        %670 = vmatprep.subr.mxu0 0.0
        %671 = vmatpush1.msra.mxu0 %v510
        %672 = vmatprep.subr.mxu0 0.0
        %673 = vmatpush1.msra.mxu0 %v511
        %674 = vmatprep.subr.mxu0 0.0
        %675 = vmatpush1.msra.mxu0 %v512
        %676 = vmatprep.subr.mxu0 0.0
        %677 = vmatpush1.msra.mxu0 %v513
        %678 = vmatprep.subr.mxu0 0.0
        %679 = vmatpush1.msra.mxu0 %v514
        %680 = vmatprep.subr.mxu0 0.0
        %681 = vmatpush1.msra.mxu0 %v515
        %682 = vmatprep.subr.mxu0 0.0
        %683 = vmatpush1.msra.mxu0 %v516
        %684 = vmatprep.subr.mxu0 0.0
        %685 = vmatpush1.msra.mxu0 %v517
        %686 = vmatprep.subr.mxu0 0.0
        %687 = vmatpush1.msra.mxu0 %v518
        %688 = vmatprep.mubr.f32.mxu0 %v446
        %689 = vmatmul.mubr.f32.gmra.mrb[0].mxu0 %v430
        %v690 = vpop.f32.mrb[0].mxu0
        %v691 = vadd.f32 %v586, %v690
        %v692 = vpop.f32.mrb[0].mxu0
        %693 = vmatprep.mubr.f32.mxu0 %v447
        %694 = vmatmul.mubr.f32.gmra.mrb[0].mxu0 %v431
        %v695 = vpop.f32.mrb[0].mxu0
        %v696 = vadd.f32 %v591, %v695
        %v697 = vpop.f32.mrb[0].mxu0
        %698 = vmatprep.mubr.f32.mxu0 %v448
        %699 = vmatmul.mubr.f32.gmra.mrb[0].mxu0 %v432
        %v700 = vpop.f32.mrb[0].mxu0
        %v701 = vadd.f32 %v596, %v700
        %v702 = vpop.f32.mrb[0].mxu0
        %703 = vmatprep.mubr.f32.mxu0 %v449
        %704 = vmatmul.mubr.f32.gmra.mrb[0].mxu0 %v433
        %v705 = vpop.f32.mrb[0].mxu0
        %v706 = vadd.f32 %v601, %v705
        %v707 = vpop.f32.mrb[0].mxu0
        %708 = vmatprep.mubr.f32.mxu0 %v450
        %709 = vmatmul.mubr.f32.gmra.mrb[0].mxu0 %v434
        %v710 = vpop.f32.mrb[0].mxu0
        %v711 = vadd.f32 %v606, %v710
        %v712 = vpop.f32.mrb[0].mxu0
        %713 = vmatprep.mubr.f32.mxu0 %v451
        %714 = vmatmul.mubr.f32.gmra.mrb[0].mxu0 %v435
        %v715 = vpop.f32.mrb[0].mxu0
        %v716 = vadd.f32 %v611, %v715
        %v717 = vpop.f32.mrb[0].mxu0
        %718 = vmatprep.mubr.f32.mxu0 %v452
        %719 = vmatmul.mubr.f32.gmra.mrb[0].mxu0 %v436
        %v720 = vpop.f32.mrb[0].mxu0
        %v721 = vadd.f32 %v616, %v720
        %v722 = vpop.f32.mrb[0].mxu0
        %723 = vmatprep.mubr.f32.mxu0 %v453
        %724 = vmatmul.mubr.f32.gmra.mrb[0].mxu0 %v437
        %v725 = vpop.f32.mrb[0].mxu0
        %v726 = vadd.f32 %v621, %v725
        %v727 = vpop.f32.mrb[0].mxu0
        %728 = vdwg.mxu0
        %v730 = vlaneseq
        %v731 = vshrl.u32 %v730, 7
        %v732 = vsub.s32 0, %v731
        %v733 = vrot.slane %v454, %v732
        %v735 = vadd.f32 %v733, %v691
        %v736 = vadd.f32 %v733, %v696
        %v737 = vadd.f32 %v733, %v701
        %v738 = vadd.f32 %v733, %v706
        %v739 = vadd.f32 %v733, %v711
        %v740 = vadd.f32 %v733, %v716
        %v741 = vadd.f32 %v733, %v721
        %v742 = vadd.f32 %v733, %v726
        %743 = vadd.xlane.f32.xlu0 %v735
        %v744 = vpop.xlane.xlu0 %743
        %745 = vadd.xlane.f32.xlu0 %v736
        %v746 = vpop.xlane.xlu0 %745
        %747 = vadd.xlane.f32.xlu0 %v737
        %v748 = vpop.xlane.xlu0 %747
        %749 = vadd.xlane.f32.xlu0 %v738
        %v750 = vpop.xlane.xlu0 %749
        %751 = vadd.xlane.f32.xlu0 %v739
        %v752 = vpop.xlane.xlu0 %751
        %753 = vadd.xlane.f32.xlu0 %v740
        %v754 = vpop.xlane.xlu0 %753
        %755 = vadd.xlane.f32.xlu0 %v741
        %v756 = vpop.xlane.xlu0 %755
        %757 = vadd.xlane.f32.xlu0 %v742
        %v758 = vpop.xlane.xlu0 %757
        %v759 = vmul.f32 %v744, 0.03125
        %v760 = vmul.f32 %v746, 0.03125
        %v761 = vmul.f32 %v748, 0.03125
        %v762 = vmul.f32 %v750, 0.03125
        %v763 = vmul.f32 %v752, 0.03125
        %v764 = vmul.f32 %v754, 0.03125
        %v765 = vmul.f32 %v756, 0.03125
        %v766 = vmul.f32 %v758, 0.03125
        %v767 = vmul.f32 %v735, %v735
        %v768 = vmul.f32 %v736, %v736
        %v769 = vmul.f32 %v737, %v737
        %v770 = vmul.f32 %v738, %v738
        %v771 = vmul.f32 %v739, %v739
        %v772 = vmul.f32 %v740, %v740
        %v773 = vmul.f32 %v741, %v741
        %v774 = vmul.f32 %v742, %v742
        %775 = vadd.xlane.f32.xlu0 %v767
        %v776 = vpop.xlane.xlu0 %775
        %777 = vadd.xlane.f32.xlu0 %v768
        %v778 = vpop.xlane.xlu0 %777
        %779 = vadd.xlane.f32.xlu0 %v769
        %v780 = vpop.xlane.xlu0 %779
        %781 = vadd.xlane.f32.xlu0 %v770
        %v782 = vpop.xlane.xlu0 %781
        %783 = vadd.xlane.f32.xlu0 %v771
        %v784 = vpop.xlane.xlu0 %783
        %785 = vadd.xlane.f32.xlu0 %v772
        %v786 = vpop.xlane.xlu0 %785
        %787 = vadd.xlane.f32.xlu0 %v773
        %v788 = vpop.xlane.xlu0 %787
        %789 = vadd.xlane.f32.xlu0 %v774
        %v790 = vpop.xlane.xlu0 %789
        %v791 = vmul.f32 %v776, 0.03125
        %v792 = vmul.f32 %v778, 0.03125
        %v793 = vmul.f32 %v780, 0.03125
        %v794 = vmul.f32 %v782, 0.03125
        %v795 = vmul.f32 %v784, 0.03125
        %v796 = vmul.f32 %v786, 0.03125
        %v797 = vmul.f32 %v788, 0.03125
        %v798 = vmul.f32 %v790, 0.03125
        %v799 = vmul.f32 %v759, %v759
        %v800 = vmul.f32 %v760, %v760
        %v801 = vmul.f32 %v761, %v761
        %v802 = vmul.f32 %v762, %v762
        %v803 = vmul.f32 %v763, %v763
        %v804 = vmul.f32 %v764, %v764
        %v805 = vmul.f32 %v765, %v765
        %v806 = vmul.f32 %v766, %v766
        %v807 = vsub.f32 %v791, %v799
        %v808 = vsub.f32 %v792, %v800
        %v809 = vsub.f32 %v793, %v801
        %v810 = vsub.f32 %v794, %v802
        %v811 = vsub.f32 %v795, %v803
        %v812 = vsub.f32 %v796, %v804
        %v813 = vsub.f32 %v797, %v805
        %v814 = vsub.f32 %v798, %v806
        %v815 = vsub.f32 %v735, %v759
        %v816 = vsub.f32 %v736, %v760
        %v817 = vsub.f32 %v737, %v761
        %v818 = vsub.f32 %v738, %v762
        %v819 = vsub.f32 %v739, %v763
        %v820 = vsub.f32 %v740, %v764
        %v821 = vsub.f32 %v741, %v765
        %v822 = vsub.f32 %v742, %v766
        %v823 = vadd.f32 %v807, 1e-05
        %v824 = vadd.f32 %v808, 1e-05
        %v825 = vadd.f32 %v809, 1e-05
        %v826 = vadd.f32 %v810, 1e-05
        %v827 = vadd.f32 %v811, 1e-05
        %v828 = vadd.f32 %v812, 1e-05
        %v829 = vadd.f32 %v813, 1e-05
        %v830 = vadd.f32 %v814, 1e-05
        %v831 = vrsqrt.pop %v823
        %v832 = vrsqrt.pop %v824
        %v833 = vrsqrt.pop %v825
        %v834 = vrsqrt.pop %v826
        %v835 = vrsqrt.pop %v827
        %v836 = vrsqrt.pop %v828
        %v837 = vrsqrt.pop %v829
        %v838 = vrsqrt.pop %v830
        %v839 = vmul.f32 %v815, %v831
        %v840 = vmul.f32 %v816, %v832
        %v841 = vmul.f32 %v817, %v833
        %v842 = vmul.f32 %v818, %v834
        %v843 = vmul.f32 %v819, %v835
        %v844 = vmul.f32 %v820, %v836
        %v845 = vmul.f32 %v821, %v837
        %v846 = vmul.f32 %v822, %v838
        %v847 = vld [vmem:[%s3] sm:$0x1]
        %v849 = vlaneseq
        %v850 = vshrl.u32 %v849, 7
        %v851 = vsub.s32 0, %v850
        %v852 = vrot.slane %v847, %v851
        %v854 = vmul.f32 %v839, %v852
        %v855 = vmul.f32 %v840, %v852
        %v856 = vmul.f32 %v841, %v852
        %v857 = vmul.f32 %v842, %v852
        %v858 = vmul.f32 %v843, %v852
        %v859 = vmul.f32 %v844, %v852
        %v860 = vmul.f32 %v845, %v852
        %v861 = vmul.f32 %v846, %v852
        %v862 = vld [vmem:[%s4] sm:$0x1]
        %v864 = vlaneseq
        %v865 = vshrl.u32 %v864, 7
        %v866 = vsub.s32 0, %v865
        %v867 = vrot.slane %v862, %v866
        %v869 = vadd.f32 %v854, %v867
        %v870 = vadd.f32 %v855, %v867
        %v871 = vadd.f32 %v856, %v867
        %v872 = vadd.f32 %v857, %v867
        %v873 = vadd.f32 %v858, %v867
        %v874 = vadd.f32 %v859, %v867
        %v875 = vadd.f32 %v860, %v867
        %v876 = vadd.f32 %v861, %v867
        %v877 = vtanh.pop %v869
        %v878 = vtanh.pop %v870
        %v879 = vtanh.pop %v871
        %v880 = vtanh.pop %v872
        %v881 = vtanh.pop %v873
        %v882 = vtanh.pop %v874
        %v883 = vtanh.pop %v875
        %v884 = vtanh.pop %v876
        %v885 = vmul.f32 %v877, 2.0
        %v886 = vmul.f32 %v878, 2.0
        %v887 = vmul.f32 %v879, 2.0
        %v888 = vmul.f32 %v880, 2.0
        %v889 = vmul.f32 %v881, 2.0
        %v890 = vmul.f32 %v882, 2.0
        %v891 = vmul.f32 %v883, 2.0
        %v892 = vmul.f32 %v884, 2.0
        %v893 = vmul.f32 %v885, %v877
        %v894 = vmul.f32 %v886, %v878
        %v895 = vmul.f32 %v887, %v879
        %v896 = vmul.f32 %v888, %v880
        %v897 = vmul.f32 %v889, %v881
        %v898 = vmul.f32 %v890, %v882
        %v899 = vmul.f32 %v891, %v883
        %v900 = vmul.f32 %v892, %v884
        %v901 = vsub.f32 %v893, 1.0
        %v902 = vsub.f32 %v894, 1.0
        %v903 = vsub.f32 %v895, 1.0
        %v904 = vsub.f32 %v896, 1.0
        %v905 = vsub.f32 %v897, 1.0
        %v906 = vsub.f32 %v898, 1.0
        %v907 = vsub.f32 %v899, 1.0
        %v908 = vsub.f32 %v900, 1.0
        %v909 = vmul.f32 %v885, %v901
        %v910 = vmul.f32 %v886, %v902
        %v911 = vmul.f32 %v887, %v903
        %v912 = vmul.f32 %v888, %v904
        %v913 = vmul.f32 %v889, %v905
        %v914 = vmul.f32 %v890, %v906
        %v915 = vmul.f32 %v891, %v907
        %v916 = vmul.f32 %v892, %v908
        %v917 = vsub.f32 %v909, %v877
        %v918 = vsub.f32 %v910, %v878
        %v919 = vsub.f32 %v911, %v879
        %v920 = vsub.f32 %v912, %v880
        %v921 = vsub.f32 %v913, %v881
        %v922 = vsub.f32 %v914, %v882
        %v923 = vsub.f32 %v915, %v883
        %v924 = vsub.f32 %v916, %v884
        %v925 = vmul.f32 %v885, %v917
        %v926 = vmul.f32 %v886, %v918
        %v927 = vmul.f32 %v887, %v919
        %v928 = vmul.f32 %v888, %v920
        %v929 = vmul.f32 %v889, %v921
        %v930 = vmul.f32 %v890, %v922
        %v931 = vmul.f32 %v891, %v923
        %v932 = vmul.f32 %v892, %v924
        %v933 = vsub.f32 %v925, %v901
        %v934 = vsub.f32 %v926, %v902
        %v935 = vsub.f32 %v927, %v903
        %v936 = vsub.f32 %v928, %v904
        %v937 = vsub.f32 %v929, %v905
        %v938 = vsub.f32 %v930, %v906
        %v939 = vsub.f32 %v931, %v907
        %v940 = vsub.f32 %v932, %v908
        %v941 = vld [vmem:[%s6] sm:$0x1]
        %v942 = vld [vmem:[#allocation7] sm:$0xff]
        %v943 = vld [vmem:[#allocation7 + $0x8] sm:$0xff]
        %v944 = vld [vmem:[#allocation7 + $0x10] sm:$0xff]
        %v945 = vld [vmem:[#allocation7 + $0x18] sm:$0xff]
        %v946 = vld [vmem:[#allocation7 + $0x20] sm:$0xff]
        %v947 = vld [vmem:[#allocation7 + $0x28] sm:$0xff]
        %v948 = vld [vmem:[#allocation7 + $0x30] sm:$0xff]
        %v949 = vld [vmem:[#allocation7 + $0x38] sm:$0xff]
        %v950 = vld [vmem:[#allocation7 + $0x40] sm:$0xff]
        %v951 = vld [vmem:[#allocation7 + $0x48] sm:$0xff]
        %v952 = vld [vmem:[#allocation7 + $0x50] sm:$0xff]
        %v953 = vld [vmem:[#allocation7 + $0x58] sm:$0xff]
        %v954 = vld [vmem:[#allocation7 + $0x60] sm:$0xff]
        %v955 = vld [vmem:[#allocation7 + $0x68] sm:$0xff]
        %v956 = vld [vmem:[#allocation7 + $0x70] sm:$0xff]
        %v957 = vld [vmem:[#allocation7 + $0x78] sm:$0xff]
        %v958 = vld [vmem:[#allocation7 + $0x80] sm:$0xff]
        %v959 = vld [vmem:[#allocation7 + $0x88] sm:$0xff]
        %v960 = vld [vmem:[#allocation7 + $0x90] sm:$0xff]
        %v961 = vld [vmem:[#allocation7 + $0x98] sm:$0xff]
        %v962 = vld [vmem:[#allocation7 + $0xa0] sm:$0xff]
        %v963 = vld [vmem:[#allocation7 + $0xa8] sm:$0xff]
        %v964 = vld [vmem:[#allocation7 + $0xb0] sm:$0xff]
        %v965 = vld [vmem:[#allocation7 + $0xb8] sm:$0xff]
        %v966 = vld [vmem:[#allocation7 + $0xc0] sm:$0xff]
        %v967 = vld [vmem:[#allocation7 + $0xc8] sm:$0xff]
        %v968 = vld [vmem:[#allocation7 + $0xd0] sm:$0xff]
        %v969 = vld [vmem:[#allocation7 + $0xd8] sm:$0xff]
        %v970 = vld [vmem:[#allocation7 + $0xe0] sm:$0xff]
        %v971 = vld [vmem:[#allocation7 + $0xe8] sm:$0xff]
        %v972 = vld [vmem:[#allocation7 + $0xf0] sm:$0xff]
        %v973 = vld [vmem:[#allocation7 + $0xf8] sm:$0xff]
        %v974 = vld [vmem:[#allocation7 + $0x100] sm:$0xff]
        %v975 = vld [vmem:[#allocation7 + $0x108] sm:$0xff]
        %v976 = vld [vmem:[#allocation7 + $0x110] sm:$0xff]
        %v977 = vld [vmem:[#allocation7 + $0x118] sm:$0xff]
        %v978 = vld [vmem:[#allocation7 + $0x120] sm:$0xff]
        %v979 = vld [vmem:[#allocation7 + $0x128] sm:$0xff]
        %v980 = vld [vmem:[#allocation7 + $0x130] sm:$0xff]
        %v981 = vld [vmem:[#allocation7 + $0x138] sm:$0xff]
        %v982 = vld [vmem:[#allocation7 + $0x140] sm:$0xff]
        %v983 = vld [vmem:[#allocation7 + $0x148] sm:$0xff]
        %v984 = vld [vmem:[#allocation7 + $0x150] sm:$0xff]
        %v985 = vld [vmem:[#allocation7 + $0x158] sm:$0xff]
        %v986 = vld [vmem:[#allocation7 + $0x160] sm:$0xff]
        %v987 = vld [vmem:[#allocation7 + $0x168] sm:$0xff]
        %v988 = vld [vmem:[#allocation7 + $0x170] sm:$0xff]
        %v989 = vld [vmem:[#allocation7 + $0x178] sm:$0xff]
        %v990 = vld [vmem:[#allocation7 + $0x180] sm:$0xff]
        %v991 = vld [vmem:[#allocation7 + $0x188] sm:$0xff]
        %v992 = vld [vmem:[#allocation7 + $0x190] sm:$0xff]
        %v993 = vld [vmem:[#allocation7 + $0x198] sm:$0xff]
        %v994 = vld [vmem:[#allocation7 + $0x1a0] sm:$0xff]
        %v995 = vld [vmem:[#allocation7 + $0x1a8] sm:$0xff]
        %v996 = vld [vmem:[#allocation7 + $0x1b0] sm:$0xff]
        %v997 = vld [vmem:[#allocation7 + $0x1b8] sm:$0xff]
        %v998 = vld [vmem:[#allocation7 + $0x1c0] sm:$0xff]
        %v999 = vld [vmem:[#allocation7 + $0x1c8] sm:$0xff]
        %v1000 = vld [vmem:[#allocation7 + $0x1d0] sm:$0xff]
        %v1001 = vld [vmem:[#allocation7 + $0x1d8] sm:$0xff]
        %v1002 = vld [vmem:[#allocation7 + $0x1e0] sm:$0xff]
        %v1003 = vld [vmem:[#allocation7 + $0x1e8] sm:$0xff]
        %v1004 = vld [vmem:[#allocation7 + $0x1f0] sm:$0xff]
        %v1005 = vld [vmem:[#allocation7 + $0x1f8] sm:$0xff]
        %1006 = vmatprep.subr.mxu0 0.0
        %1007 = vmatpush1.msra.mxu0 %v942
        %1008 = vmatprep.subr.mxu0 0.0
        %1009 = vmatpush1.msra.mxu0 %v943
        %1010 = vmatprep.subr.mxu0 0.0
        %1011 = vmatpush1.msra.mxu0 %v944
        %1012 = vmatprep.subr.mxu0 0.0
        %1013 = vmatpush1.msra.mxu0 %v945
        %1014 = vmatprep.subr.mxu0 0.0
        %1015 = vmatpush1.msra.mxu0 %v946
        %1016 = vmatprep.subr.mxu0 0.0
        %1017 = vmatpush1.msra.mxu0 %v947
        %1018 = vmatprep.subr.mxu0 0.0
        %1019 = vmatpush1.msra.mxu0 %v948
        %1020 = vmatprep.subr.mxu0 0.0
        %1021 = vmatpush1.msra.mxu0 %v949
        %1022 = vmatprep.subr.mxu0 0.0
        %1023 = vmatpush1.msra.mxu0 %v950
        %1024 = vmatprep.subr.mxu0 0.0
        %1025 = vmatpush1.msra.mxu0 %v951
        %1026 = vmatprep.subr.mxu0 0.0
        %1027 = vmatpush1.msra.mxu0 %v952
        %1028 = vmatprep.subr.mxu0 0.0
        %1029 = vmatpush1.msra.mxu0 %v953
        %1030 = vmatprep.subr.mxu0 0.0
        %1031 = vmatpush1.msra.mxu0 %v954
        %1032 = vmatprep.subr.mxu0 0.0
        %1033 = vmatpush1.msra.mxu0 %v955
        %1034 = vmatprep.subr.mxu0 0.0
        %1035 = vmatpush1.msra.mxu0 %v956
        %1036 = vmatprep.subr.mxu0 0.0
        %1037 = vmatpush1.msra.mxu0 %v957
        %1038 = vmatprep.subr.mxu0 0.0
        %1039 = vmatpush1.msra.mxu0 %v958
        %1040 = vmatprep.subr.mxu0 0.0
        %1041 = vmatpush1.msra.mxu0 %v959
        %1042 = vmatprep.subr.mxu0 0.0
        %1043 = vmatpush1.msra.mxu0 %v960
        %1044 = vmatprep.subr.mxu0 0.0
        %1045 = vmatpush1.msra.mxu0 %v961
        %1046 = vmatprep.subr.mxu0 0.0
        %1047 = vmatpush1.msra.mxu0 %v962
        %1048 = vmatprep.subr.mxu0 0.0
        %1049 = vmatpush1.msra.mxu0 %v963
        %1050 = vmatprep.subr.mxu0 0.0
        %1051 = vmatpush1.msra.mxu0 %v964
        %1052 = vmatprep.subr.mxu0 0.0
        %1053 = vmatpush1.msra.mxu0 %v965
        %1054 = vmatprep.subr.mxu0 0.0
        %1055 = vmatpush1.msra.mxu0 %v966
        %1056 = vmatprep.subr.mxu0 0.0
        %1057 = vmatpush1.msra.mxu0 %v967
        %1058 = vmatprep.subr.mxu0 0.0
        %1059 = vmatpush1.msra.mxu0 %v968
        %1060 = vmatprep.subr.mxu0 0.0
        %1061 = vmatpush1.msra.mxu0 %v969
        %1062 = vmatprep.subr.mxu0 0.0
        %1063 = vmatpush1.msra.mxu0 %v970
        %1064 = vmatprep.subr.mxu0 0.0
        %1065 = vmatpush1.msra.mxu0 %v971
        %1066 = vmatprep.subr.mxu0 0.0
        %1067 = vmatpush1.msra.mxu0 %v972
        %1068 = vmatprep.subr.mxu0 0.0
        %1069 = vmatpush1.msra.mxu0 %v973
        %1070 = vmatprep.mubr.f32.mxu0 %v901
        %1071 = vmatmul.mubr.f32.gmra.mrb[0].mxu0 %v877
        %v1072 = vpop.f32.mrb[0].mxu0
        %v1073 = vadd.f32 0.0, %v1072
        %v1074 = vpop.f32.mrb[0].mxu0
        %1075 = vmatprep.mubr.f32.mxu0 %v902
        %1076 = vmatmul.mubr.f32.gmra.mrb[0].mxu0 %v878
        %v1077 = vpop.f32.mrb[0].mxu0
        %v1078 = vadd.f32 0.0, %v1077
        %v1079 = vpop.f32.mrb[0].mxu0
        %1080 = vmatprep.mubr.f32.mxu0 %v903
        %1081 = vmatmul.mubr.f32.gmra.mrb[0].mxu0 %v879
        %v1082 = vpop.f32.mrb[0].mxu0
        %v1083 = vadd.f32 0.0, %v1082
        %v1084 = vpop.f32.mrb[0].mxu0
        %1085 = vmatprep.mubr.f32.mxu0 %v904
        %1086 = vmatmul.mubr.f32.gmra.mrb[0].mxu0 %v880
        %v1087 = vpop.f32.mrb[0].mxu0
        %v1088 = vadd.f32 0.0, %v1087
        %v1089 = vpop.f32.mrb[0].mxu0
        %1090 = vmatprep.mubr.f32.mxu0 %v905
        %1091 = vmatmul.mubr.f32.gmra.mrb[0].mxu0 %v881
        %v1092 = vpop.f32.mrb[0].mxu0
        %v1093 = vadd.f32 0.0, %v1092
        %v1094 = vpop.f32.mrb[0].mxu0
        %1095 = vmatprep.mubr.f32.mxu0 %v906
        %1096 = vmatmul.mubr.f32.gmra.mrb[0].mxu0 %v882
        %v1097 = vpop.f32.mrb[0].mxu0
        %v1098 = vadd.f32 0.0, %v1097
        %v1099 = vpop.f32.mrb[0].mxu0
        %1100 = vmatprep.mubr.f32.mxu0 %v907
        %1101 = vmatmul.mubr.f32.gmra.mrb[0].mxu0 %v883
        %v1102 = vpop.f32.mrb[0].mxu0
        %v1103 = vadd.f32 0.0, %v1102
        %v1104 = vpop.f32.mrb[0].mxu0
        %1105 = vmatprep.mubr.f32.mxu0 %v908
        %1106 = vmatmul.mubr.f32.gmra.mrb[0].mxu0 %v884
        %v1107 = vpop.f32.mrb[0].mxu0
        %v1108 = vadd.f32 0.0, %v1107
        %v1109 = vpop.f32.mrb[0].mxu0
        %1110 = vdwg.mxu0
        %1111 = vmatprep.subr.mxu0 0.0
        %1112 = vmatpush1.msra.mxu0 %v974
        %1113 = vmatprep.subr.mxu0 0.0
        %1114 = vmatpush1.msra.mxu0 %v975
        %1115 = vmatprep.subr.mxu0 0.0
        %1116 = vmatpush1.msra.mxu0 %v976
        %1117 = vmatprep.subr.mxu0 0.0
        %1118 = vmatpush1.msra.mxu0 %v977
        %1119 = vmatprep.subr.mxu0 0.0
        %1120 = vmatpush1.msra.mxu0 %v978
        %1121 = vmatprep.subr.mxu0 0.0
        %1122 = vmatpush1.msra.mxu0 %v979
        %1123 = vmatprep.subr.mxu0 0.0
        %1124 = vmatpush1.msra.mxu0 %v980
        %1125 = vmatprep.subr.mxu0 0.0
        %1126 = vmatpush1.msra.mxu0 %v981
        %1127 = vmatprep.subr.mxu0 0.0
        %1128 = vmatpush1.msra.mxu0 %v982
        %1129 = vmatprep.subr.mxu0 0.0
        %1130 = vmatpush1.msra.mxu0 %v983
        %1131 = vmatprep.subr.mxu0 0.0
        %1132 = vmatpush1.msra.mxu0 %v984
        %1133 = vmatprep.subr.mxu0 0.0
        %1134 = vmatpush1.msra.mxu0 %v985
        %1135 = vmatprep.subr.mxu0 0.0
        %1136 = vmatpush1.msra.mxu0 %v986
        %1137 = vmatprep.subr.mxu0 0.0
        %1138 = vmatpush1.msra.mxu0 %v987
        %1139 = vmatprep.subr.mxu0 0.0
        %1140 = vmatpush1.msra.mxu0 %v988
        %1141 = vmatprep.subr.mxu0 0.0
        %1142 = vmatpush1.msra.mxu0 %v989
        %1143 = vmatprep.subr.mxu0 0.0
        %1144 = vmatpush1.msra.mxu0 %v990
        %1145 = vmatprep.subr.mxu0 0.0
        %1146 = vmatpush1.msra.mxu0 %v991
        %1147 = vmatprep.subr.mxu0 0.0
        %1148 = vmatpush1.msra.mxu0 %v992
        %1149 = vmatprep.subr.mxu0 0.0
        %1150 = vmatpush1.msra.mxu0 %v993
        %1151 = vmatprep.subr.mxu0 0.0
        %1152 = vmatpush1.msra.mxu0 %v994
        %1153 = vmatprep.subr.mxu0 0.0
        %1154 = vmatpush1.msra.mxu0 %v995
        %1155 = vmatprep.subr.mxu0 0.0
        %1156 = vmatpush1.msra.mxu0 %v996
        %1157 = vmatprep.subr.mxu0 0.0
        %1158 = vmatpush1.msra.mxu0 %v997
        %1159 = vmatprep.subr.mxu0 0.0
        %1160 = vmatpush1.msra.mxu0 %v998
        %1161 = vmatprep.subr.mxu0 0.0
        %1162 = vmatpush1.msra.mxu0 %v999
        %1163 = vmatprep.subr.mxu0 0.0
        %1164 = vmatpush1.msra.mxu0 %v1000
        %1165 = vmatprep.subr.mxu0 0.0
        %1166 = vmatpush1.msra.mxu0 %v1001
        %1167 = vmatprep.subr.mxu0 0.0
        %1168 = vmatpush1.msra.mxu0 %v1002
        %1169 = vmatprep.subr.mxu0 0.0
        %1170 = vmatpush1.msra.mxu0 %v1003
        %1171 = vmatprep.subr.mxu0 0.0
        %1172 = vmatpush1.msra.mxu0 %v1004
        %1173 = vmatprep.subr.mxu0 0.0
        %1174 = vmatpush1.msra.mxu0 %v1005
        %1175 = vmatprep.mubr.f32.mxu0 %v933
        %1176 = vmatmul.mubr.f32.gmra.mrb[0].mxu0 %v917
        %v1177 = vpop.f32.mrb[0].mxu0
        %v1178 = vadd.f32 %v1073, %v1177
        %v1179 = vpop.f32.mrb[0].mxu0
        %1180 = vmatprep.mubr.f32.mxu0 %v934
        %1181 = vmatmul.mubr.f32.gmra.mrb[0].mxu0 %v918
        %v1182 = vpop.f32.mrb[0].mxu0
        %v1183 = vadd.f32 %v1078, %v1182
        %v1184 = vpop.f32.mrb[0].mxu0
        %1185 = vmatprep.mubr.f32.mxu0 %v935
        %1186 = vmatmul.mubr.f32.gmra.mrb[0].mxu0 %v919
        %v1187 = vpop.f32.mrb[0].mxu0
        %v1188 = vadd.f32 %v1083, %v1187
        %v1189 = vpop.f32.mrb[0].mxu0
        %1190 = vmatprep.mubr.f32.mxu0 %v936
        %1191 = vmatmul.mubr.f32.gmra.mrb[0].mxu0 %v920
        %v1192 = vpop.f32.mrb[0].mxu0
        %v1193 = vadd.f32 %v1088, %v1192
        %v1194 = vpop.f32.mrb[0].mxu0
        %1195 = vmatprep.mubr.f32.mxu0 %v937
        %1196 = vmatmul.mubr.f32.gmra.mrb[0].mxu0 %v921
        %v1197 = vpop.f32.mrb[0].mxu0
        %v1198 = vadd.f32 %v1093, %v1197
        %v1199 = vpop.f32.mrb[0].mxu0
        %1200 = vmatprep.mubr.f32.mxu0 %v938
        %1201 = vmatmul.mubr.f32.gmra.mrb[0].mxu0 %v922
        %v1202 = vpop.f32.mrb[0].mxu0
        %v1203 = vadd.f32 %v1098, %v1202
        %v1204 = vpop.f32.mrb[0].mxu0
        %1205 = vmatprep.mubr.f32.mxu0 %v939
        %1206 = vmatmul.mubr.f32.gmra.mrb[0].mxu0 %v923
        %v1207 = vpop.f32.mrb[0].mxu0
        %v1208 = vadd.f32 %v1103, %v1207
        %v1209 = vpop.f32.mrb[0].mxu0
        %1210 = vmatprep.mubr.f32.mxu0 %v940
        %1211 = vmatmul.mubr.f32.gmra.mrb[0].mxu0 %v924
        %v1212 = vpop.f32.mrb[0].mxu0
        %v1213 = vadd.f32 %v1108, %v1212
        %v1214 = vpop.f32.mrb[0].mxu0
        %1215 = vdwg.mxu0
        %v1217 = vlaneseq
        %v1218 = vshrl.u32 %v1217, 7
        %v1219 = vsub.s32 0, %v1218
        %v1220 = vrot.slane %v941, %v1219
        %v1222 = vadd.f32 %v1220, %v1178
        %v1223 = vadd.f32 %v1220, %v1183
        %v1224 = vadd.f32 %v1220, %v1188
        %v1225 = vadd.f32 %v1220, %v1193
        %v1226 = vadd.f32 %v1220, %v1198
        %v1227 = vadd.f32 %v1220, %v1203
        %v1228 = vadd.f32 %v1220, %v1208
        %v1229 = vadd.f32 %v1220, %v1213
        %1230 = vadd.xlane.f32.xlu0 %v1222
        %v1231 = vpop.xlane.xlu0 %1230
        %1232 = vadd.xlane.f32.xlu0 %v1223
        %v1233 = vpop.xlane.xlu0 %1232
        %1234 = vadd.xlane.f32.xlu0 %v1224
        %v1235 = vpop.xlane.xlu0 %1234
        %1236 = vadd.xlane.f32.xlu0 %v1225
        %v1237 = vpop.xlane.xlu0 %1236
        %1238 = vadd.xlane.f32.xlu0 %v1226
        %v1239 = vpop.xlane.xlu0 %1238
        %1240 = vadd.xlane.f32.xlu0 %v1227
        %v1241 = vpop.xlane.xlu0 %1240
        %1242 = vadd.xlane.f32.xlu0 %v1228
        %v1243 = vpop.xlane.xlu0 %1242
        %1244 = vadd.xlane.f32.xlu0 %v1229
        %v1245 = vpop.xlane.xlu0 %1244
        %v1246 = vmul.f32 %v1231, 0.0625
        %v1247 = vmul.f32 %v1233, 0.0625
        %v1248 = vmul.f32 %v1235, 0.0625
        %v1249 = vmul.f32 %v1237, 0.0625
        %v1250 = vmul.f32 %v1239, 0.0625
        %v1251 = vmul.f32 %v1241, 0.0625
        %v1252 = vmul.f32 %v1243, 0.0625
        %v1253 = vmul.f32 %v1245, 0.0625
        %v1254 = vmul.f32 %v1222, %v1222
        %v1255 = vmul.f32 %v1223, %v1223
        %v1256 = vmul.f32 %v1224, %v1224
        %v1257 = vmul.f32 %v1225, %v1225
        %v1258 = vmul.f32 %v1226, %v1226
        %v1259 = vmul.f32 %v1227, %v1227
        %v1260 = vmul.f32 %v1228, %v1228
        %v1261 = vmul.f32 %v1229, %v1229
        %1262 = vadd.xlane.f32.xlu0 %v1254
        %v1263 = vpop.xlane.xlu0 %1262
        %1264 = vadd.xlane.f32.xlu0 %v1255
        %v1265 = vpop.xlane.xlu0 %1264
        %1266 = vadd.xlane.f32.xlu0 %v1256
        %v1267 = vpop.xlane.xlu0 %1266
        %1268 = vadd.xlane.f32.xlu0 %v1257
        %v1269 = vpop.xlane.xlu0 %1268
        %1270 = vadd.xlane.f32.xlu0 %v1258
        %v1271 = vpop.xlane.xlu0 %1270
        %1272 = vadd.xlane.f32.xlu0 %v1259
        %v1273 = vpop.xlane.xlu0 %1272
        %1274 = vadd.xlane.f32.xlu0 %v1260
        %v1275 = vpop.xlane.xlu0 %1274
        %1276 = vadd.xlane.f32.xlu0 %v1261
        %v1277 = vpop.xlane.xlu0 %1276
        %v1278 = vmul.f32 %v1263, 0.0625
        %v1279 = vmul.f32 %v1265, 0.0625
        %v1280 = vmul.f32 %v1267, 0.0625
        %v1281 = vmul.f32 %v1269, 0.0625
        %v1282 = vmul.f32 %v1271, 0.0625
        %v1283 = vmul.f32 %v1273, 0.0625
        %v1284 = vmul.f32 %v1275, 0.0625
        %v1285 = vmul.f32 %v1277, 0.0625
        %v1286 = vmul.f32 %v1246, %v1246
        %v1287 = vmul.f32 %v1247, %v1247
        %v1288 = vmul.f32 %v1248, %v1248
        %v1289 = vmul.f32 %v1249, %v1249
        %v1290 = vmul.f32 %v1250, %v1250
        %v1291 = vmul.f32 %v1251, %v1251
        %v1292 = vmul.f32 %v1252, %v1252
        %v1293 = vmul.f32 %v1253, %v1253
        %v1294 = vsub.f32 %v1278, %v1286
        %v1295 = vsub.f32 %v1279, %v1287
        %v1296 = vsub.f32 %v1280, %v1288
        %v1297 = vsub.f32 %v1281, %v1289
        %v1298 = vsub.f32 %v1282, %v1290
        %v1299 = vsub.f32 %v1283, %v1291
        %v1300 = vsub.f32 %v1284, %v1292
        %v1301 = vsub.f32 %v1285, %v1293
        %v1302 = vsub.f32 %v1222, %v1246
        %v1303 = vsub.f32 %v1223, %v1247
        %v1304 = vsub.f32 %v1224, %v1248
        %v1305 = vsub.f32 %v1225, %v1249
        %v1306 = vsub.f32 %v1226, %v1250
        %v1307 = vsub.f32 %v1227, %v1251
        %v1308 = vsub.f32 %v1228, %v1252
        %v1309 = vsub.f32 %v1229, %v1253
        %v1310 = vadd.f32 %v1294, 1e-05
        %v1311 = vadd.f32 %v1295, 1e-05
        %v1312 = vadd.f32 %v1296, 1e-05
        %v1313 = vadd.f32 %v1297, 1e-05
        %v1314 = vadd.f32 %v1298, 1e-05
        %v1315 = vadd.f32 %v1299, 1e-05
        %v1316 = vadd.f32 %v1300, 1e-05
        %v1317 = vadd.f32 %v1301, 1e-05
        %v1318 = vrsqrt.pop %v1310
        %v1319 = vrsqrt.pop %v1311
        %v1320 = vrsqrt.pop %v1312
        %v1321 = vrsqrt.pop %v1313
        %v1322 = vrsqrt.pop %v1314
        %v1323 = vrsqrt.pop %v1315
        %v1324 = vrsqrt.pop %v1316
        %v1325 = vrsqrt.pop %v1317
        %v1326 = vmul.f32 %v1302, %v1318
        %v1327 = vmul.f32 %v1303, %v1319
        %v1328 = vmul.f32 %v1304, %v1320
        %v1329 = vmul.f32 %v1305, %v1321
        %v1330 = vmul.f32 %v1306, %v1322
        %v1331 = vmul.f32 %v1307, %v1323
        %v1332 = vmul.f32 %v1308, %v1324
        %v1333 = vmul.f32 %v1309, %v1325
        %v1334 = vld [vmem:[%s7] sm:$0x1]
        %v1336 = vlaneseq
        %v1337 = vshrl.u32 %v1336, 7
        %v1338 = vsub.s32 0, %v1337
        %v1339 = vrot.slane %v1334, %v1338
        %v1341 = vmul.f32 %v1326, %v1339
        %v1342 = vmul.f32 %v1327, %v1339
        %v1343 = vmul.f32 %v1328, %v1339
        %v1344 = vmul.f32 %v1329, %v1339
        %v1345 = vmul.f32 %v1330, %v1339
        %v1346 = vmul.f32 %v1331, %v1339
        %v1347 = vmul.f32 %v1332, %v1339
        %v1348 = vmul.f32 %v1333, %v1339
        %v1349 = vld [vmem:[%s8] sm:$0x1]
        %v1351 = vlaneseq
        %v1352 = vshrl.u32 %v1351, 7
        %v1353 = vsub.s32 0, %v1352
        %v1354 = vrot.slane %v1349, %v1353
        %v1356 = vadd.f32 %v1341, %v1354
        %v1357 = vadd.f32 %v1342, %v1354
        %v1358 = vadd.f32 %v1343, %v1354
        %v1359 = vadd.f32 %v1344, %v1354
        %v1360 = vadd.f32 %v1345, %v1354
        %v1361 = vadd.f32 %v1346, %v1354
        %v1362 = vadd.f32 %v1347, %v1354
        %v1363 = vadd.f32 %v1348, %v1354
        %1364 = vst [vmem:[%s379] sm:$0xff] %v1356
        %1365 = vst [vmem:[%s379 + $0x8] sm:$0xff] %v1357
        %1366 = vst [vmem:[%s379 + $0x10] sm:$0xff] %v1358
        %1367 = vst [vmem:[%s379 + $0x18] sm:$0xff] %v1359
        %1368 = vst [vmem:[%s379 + $0x20] sm:$0xff] %v1360
        %1369 = vst [vmem:[%s379 + $0x28] sm:$0xff] %v1361
        %1370 = vst [vmem:[%s379 + $0x30] sm:$0xff] %v1362
        %1371 = vst [vmem:[%s379 + $0x38] sm:$0xff] %v1363
        %s1372 = sand.u32 %s229, 1
        %s1373 = scalar_lea.sflag [#allocation4], %s1372
        %s1374 = sand.u32 %s229, 1
        %s1375 = smul.addr %s1374, 64
        %s1376 = scalar_lea.vmem [#allocation8], %s1375
        // Predicated region
        $region69: #{tpu_custom_call.1} parent=55 // pred_check
          %p1377 = pneg %p239
        $region70: #{tpu_custom_call.1} parent=55 // pred_check_branch
          %1379 = sbr.rel (%p1377) target = $region72
        $region71: #{tpu_custom_call.1} parent=55 // pred_region
          %s1380 = smul.u32 8, %s27
          %s1382 = ssub.s32 1024, 1024
          %1383 = vsyncadd %s1373, %s1382
          %s1384 = smul.addr %s1380, 128
          %s1385 = scalar_lea.hbm %s9, %s1384
          %s1386 = sshll.u32 %s1376, 4
          %s1387 = int_to_ptr.vmem [resolvable:$true] %s1386
          %1392 = dma.vmem_to_hbm [thread:$0]  %s1387, 1024, %s1385, %s1373, 128, 128, 8
        $region72: #{tpu_custom_call.1} parent=55 // pred_fallthru
          _
      $region56: #{tpu_custom_call.1} parent=5 // pred_fallthru
        _
      %p1393 = scmp.le.s32.totalorder 2, %s22
      // Predicated region
      $region73: #{tpu_custom_call.1} parent=5 // pred_check
        %p1394 = pneg %p1393
      $region74: #{tpu_custom_call.1} parent=5 // pred_check_branch
        %1396 = sbr.rel (%p1394) target = $region76
      $region75: #{tpu_custom_call.1} parent=5 // pred_region
        %s1397 = ssub.s32 %s22, 2
        // Predicated region
        $region77: #{tpu_custom_call.1} parent=75 // pred_check
          %p1398 = pneg %p245
        $region78: #{tpu_custom_call.1} parent=75 // pred_check_branch
          %1400 = sbr.rel (%p1398) target = $region80
        $region79: #{tpu_custom_call.1} parent=75 // pred_region
          %s1401 = sand.u32 %s230, 1
          %s1402 = scalar_lea.sflag [#allocation4], %s1401
          %s1403 = sand.u32 %s230, 1
          %s1404 = smul.addr %s1403, 64
          %s1405 = scalar_lea.vmem [#allocation8], %s1404
          %1406 = dma.done %s1402, 1024
        $region80: #{tpu_custom_call.1} parent=75 // pred_fallthru
          _
      $region76: #{tpu_custom_call.1} parent=5 // pred_fallthru
        _
    $region6: #{tpu_custom_call.1} parent=1 // loop_footer
      %s26 = sadd.s32 1, %s22
    $region7: #{tpu_custom_call.1} parent=1 // loop_footer_branch
      %21 = sbr.rel target = $region3
    $region8: #{tpu_custom_call.1} parent=1 // loop_exit
      _
    %1407 = vsyncpa [#allocation3], 1
    %s1408 = scalar_lea.sflag [#allocation3], 1
    %1409 = vsyncpa %s1408, 1
    %1410 = vsyncpa [#allocation6], 1
    %1411 = vsyncpa [#allocation4], 1
    %s1412 = scalar_lea.sflag [#allocation4], 1
    %1413 = vsyncpa %s1412, 1

</llo_original>
